<compile_context>
chip_gen: v7x
topology: tpu7x:2x2x1
jax: 0.10.0
libtpu: 0.0.40
codegen_flags: <defaults>
</compile_context>

<pallas_src>
import functools

import jax
import jax.numpy as jnp
import numpy as np
from jax.experimental import pallas as pl
from jax.experimental.pallas import tpu as pltpu


# ----------------------- host-side weight preparation ------------------------

def _fold_conv_rows(w, w_in, pad, stride):
    """Fold an OIHW conv weight into per-kernel-row matmul matrices over the
    *unpadded* input width (the width zero-padding is folded into the weight:
    kernel columns that land in the pad are dropped, they multiply zeros).

        out_row[i] = sum_kh padded_row[stride*i + kh] @ A[kh]
        A[kh][wi*Cin + ci, wo*Cout + co] = w[co, ci, kh, kw],  kw = stride*wo+kw'
    """
    w = np.asarray(w, np.float32)                       # (Cout, Cin, k, k)
    c_out, c_in, k, _ = w.shape
    w_out = (w_in + 2 * pad - k) // stride + 1
    a = np.zeros((k, w_in * c_in, w_out * c_out), np.float32)
    for kh in range(k):
        for wo in range(w_out):
            for kw in range(k):
                wi = stride * wo + kw - pad
                if 0 <= wi < w_in:
                    a[kh, wi * c_in:(wi + 1) * c_in,
                      wo * c_out:(wo + 1) * c_out] = w[:, :, kh, kw].T
    return a


def _pair_fold_first(a0):
    """2x2 block weights for the stride-1 first conv whose input is stored as
    row *pairs* on the lane axis; the output is produced as paired rows
    [row 2s | row 2s+1] with k//2+1 contiguous-read matmuls."""
    k, k_in, n_out = a0.shape
    zero = np.zeros((k_in, n_out), np.float32)

    def a(i):
        return a0[i] if 0 <= i < k else zero

    nj = k // 2 + 1
    w = np.zeros((nj, 2 * k_in, 2 * n_out), np.float32)
    for j in range(nj):
        w[j, :k_in, :n_out] = a(2 * j)         # pair top  -> even out row (kh=2j)
        w[j, k_in:, :n_out] = a(2 * j + 1)     # pair bot  -> even out row (kh=2j+1)
        w[j, :k_in, n_out:] = a(2 * j - 1)     # pair top  -> odd  out row (kh=2j-1)
        w[j, k_in:, n_out:] = a(2 * j)         # pair bot  -> odd  out row (kh=2j)
    return w


def _pair_fold_down(a1):
    """Weights for a k=4 / stride-2 conv whose zero-padded input is stored as
    row pairs on lanes:  out_row[ho] = pair[ho] @ W[0] + pair[ho+1] @ W[1]."""
    k, k_in, n_out = a1.shape
    assert k == 4
    w = np.zeros((2, 2 * k_in, n_out), np.float32)
    for j in range(2):
        w[j, :k_in, :] = a1[2 * j]             # padded row 2t   -> kh = 2j
        w[j, k_in:, :] = a1[2 * j + 1]         # padded row 2t+1 -> kh = 2j+1
    return w


def _choose_batch_tile(n):
    """Even batch tile folded into the matmul M dimension; keep >=2 grid steps
    when the batch allows it so both v7x TensorCores get work."""
    for bt in (8, 6, 4, 2):
        if n % bt == 0 and n // bt >= 2:
            return bt
    return n            # tiny batch: one fat grid step (n is even here)


# ------------------------------ public wrapper --------------------------------

def style_encoder_forward(x_nchw, layers, final):
    """StyleEncoder forward: NCHW input -> (N, style_dim, 1, 1), one pallas_call."""
    assert len(layers) == 3, "fused kernel covers the MUNIT default n_downsample=2"
    # TODO(synk): n_downsample > 2 would add further stride-2 stages; only the
    # module default (2) is fused here.

    (w0, b0), s0, p0, pm0, _ = layers[0]
    (w1, b1), s1s, p1, pm1, _ = layers[1]
    (w2, b2), s2s, p2, pm2, _ = layers[2]
    assert s0 == 1 and p0 == 3 and pm0 == "reflect" and w0.shape[2] == 7
    assert s1s == 2 and p1 == 1 and pm1 == "constant" and w1.shape[2] == 4
    assert s2s == 2 and p2 == 1 and pm2 == "constant" and w2.shape[2] == 4
    wf, bf = final

    x = jnp.transpose(x_nchw, (0, 2, 3, 1)).astype(jnp.float32)   # NCHW -> NHWC
    n_orig = x.shape[0]
    if x.shape[0] % 2:                        # keep the batch tile even so every
        x = jnp.concatenate([x, jnp.zeros_like(x[:1])], axis=0)   # bf16 sublane
    n, h, w_sp, c_in = x.shape                                    # write is paired
    assert h % 4 == 0 and w_sp % 4 == 0, "two /2 downsamples need H, W % 4 == 0"

    c0, c1, c2 = w0.shape[0], w1.shape[0], w2.shape[0]
    style_dim = wf.shape[0]

    h0, w0_sp = h, w_sp                        # layer-0 output spatial size
    h1, w1_sp = h0 // 2, w0_sp // 2            # first downsample
    h2, w2_sp = h1 // 2, w1_sp // 2            # second downsample
    hp0 = h + 2 * p0                           # reflect-padded input height

    k0 = (w_sp + 2 * p0) * c_in                # lanes of one padded input row
    n0 = w0_sp * c0                            # lanes of one layer-0 output row
    n1 = w1_sp * c1
    n2 = w2_sp * c2

    bt = _choose_batch_tile(n)                 # images folded into matmul M
    g = n // bt
    m0 = (h0 // 2) * bt                        # layer-0 paired output rows
    m1 = h1 * bt                               # layer-1 output rows

    # ---- host folding of all weights ----------------------------------------
    a0 = _fold_conv_rows(w0, w_sp + 2 * p0, 0, 1)   # reflect pad lives in the data
    a1 = _fold_conv_rows(w1, w0_sp, p1, 2)          # width zero-pad folded in
    a2 = _fold_conv_rows(w2, w1_sp, p2, 2)
    w0_blk = jnp.asarray(_pair_fold_first(a0), jnp.bfloat16)   # (4, 2*k0, 2*n0)
    w1_blk = jnp.asarray(_pair_fold_down(a1), jnp.bfloat16)    # (2, 2*n0, n1)
    w2_blk = jnp.asarray(a2, jnp.bfloat16)                     # (4, n1, n2)

    b0_row = jnp.asarray(np.tile(np.asarray(b0, np.float32), 2 * w0_sp)[None, :])
    b1_row = jnp.asarray(np.tile(np.asarray(b1, np.float32), w1_sp)[None, :])
    b2_row = jnp.asarray(np.tile(np.asarray(b2, np.float32), w2_sp)[None, :])

    # AdaptiveAvgPool2d(1) + Conv2d(c2, style_dim, 1): fold 1/(H2*W2) and the
    # spatial column reduction into a (n2, style_dim) matrix.
    wf_mat = np.asarray(wf, np.float32).reshape(style_dim, c2).T
    wf_big = jnp.asarray(np.tile(wf_mat, (w2_sp, 1)) / float(h2 * w2_sp))
    bf_row = jnp.asarray(np.asarray(bf, np.float32)[None, :])

    # ---- host input plumbing: reflect pad, pair rows on lanes, interleave the
    # batch inside each group (row = super_row * bt + b), cast to bf16.
    x_p = jnp.pad(x, ((0, 0), (p0, p0), (p0, p0), (0, 0)), mode="reflect")
    nsup0 = hp0 // 2
    x_pair = x_p.reshape(n, nsup0, 2 * k0)
    x_grp = x_pair.reshape(g, bt, nsup0, 2 * k0).transpose(0, 2, 1, 3)
    x_grp = x_grp.reshape(g, nsup0 * bt, 2 * k0)
    r0 = ((nsup0 * bt + 15) // 16) * 16              # bf16 sublane-tile aligned
    x_grp = jnp.pad(x_grp, ((0, 0), (0, r0 - nsup0 * bt), (0, 0)))
    x_pack = x_grp.reshape(g * r0, 2 * k0).astype(jnp.bfloat16)

    # ------------------------------ fused kernel -----------------------------
    def kernel(x_ref, w0_ref, b0_ref, w1_ref, b1_ref, w2_ref, b2_ref,
               wf_ref, bf_ref, o_ref, s1_ref, s2_ref, pool_ref):
        dot = functools.partial(jnp.dot, preferred_element_type=jnp.float32)

        # ---- layer 0: ReflectionPad2d(3) + Conv(cin, c0, 7) + ReLU ----------
        # rows read directly from the BlockSpec block (no staging copy).
        acc = None
        for j in range(w0_blk.shape[0]):             # 4 paired row-matmuls
            rows = x_ref[j * bt:j * bt + m0, :]      # (m0, 2*k0) bf16, contiguous
            part = dot(rows, w0_ref[j])              # (m0, 2*n0) f32
            acc = part if acc is None else acc + part
        act0 = jnp.maximum(acc + b0_ref[...], 0.0).astype(jnp.bfloat16)
        even, odd = act0[:, :n0], act0[:, n0:]       # out rows 2s / 2s+1

        # s1 (bf16, single cast): row t*bt+b = [padded row 2t | padded row 2t+1]
        # of layer 1's zero-padded input; padded row r+1 is activation row r.
        # Only the two border rows are zeroed, all stores are lane-aligned.
        s1_ref[0:m0, n0:2 * n0] = even                                # rows 1,3,...
        s1_ref[bt:m0 + bt, 0:n0] = odd                                # rows 2,4,...
        s1_ref[0:bt, 0:n0] = jnp.zeros((bt, n0), jnp.bfloat16)        # top pad
        s1_ref[m0:m0 + bt, n0:2 * n0] = jnp.zeros((bt, n0), jnp.bfloat16)  # bottom

        # ---- layer 1: Conv(c0, c1, 4, stride 2, pad 1) + ReLU ---------------
        # paired input layout -> 2 contiguous-read matmuls, no strided loads.
        acc = None
        for j in range(2):
            rows = s1_ref[j * bt:j * bt + m1, :]     # (m1, 2*n0) bf16
            part = dot(rows, w1_ref[j])              # (m1, n1) f32
            acc = part if acc is None else acc + part
        act1 = jnp.maximum(acc + b1_ref[...], 0.0)   # (m1, n1) f32

        # stage act1 as plain zero-padded rows (batch-interleaved, f32).
        s2_ref[bt:m1 + bt, :] = act1
        s2_ref[0:bt, :] = jnp.zeros((bt, n1), jnp.float32)
        s2_ref[m1 + bt:m1 + 2 * bt, :] = jnp.zeros((bt, n1), jnp.float32)

        # ---- layer 2: Conv(c1, c2, 4, stride 2, pad 1) + ReLU + global pool -
        # stride-2 row selection kept on the proven f32 pl.ds(..., stride=) path
        # (strided sublane reads of packed bf16 are the flagged lowering risk);
        # the pool sums rows per image, so per-image M ordering is free.
        for b in range(bt):
            acc = None
            for kh in range(4):
                rows = s2_ref[pl.ds(kh * bt + b, h2, stride=2 * bt), :]
                part = dot(rows.astype(jnp.bfloat16), w2_ref[kh])     # (h2, n2)
                acc = part if acc is None else acc + part
            act2 = jnp.maximum(acc + b2_ref[...], 0.0)
            pool_ref[b:b + 1, :] = jnp.sum(act2, axis=0, keepdims=True)

        # AdaptiveAvgPool2d(1) + 1x1 conv: scale and column reduction are folded
        # into wf; one tiny f32 matmul and one (bt, style_dim) output slab.
        o_ref[0] = dot(pool_ref[...], wf_ref[...]) + bf_ref[...]

    # ------------------------------- pallas_call ------------------------------
    in_specs = [
        pl.BlockSpec((r0, 2 * k0), lambda i: (i, 0)),
        pl.BlockSpec(w0_blk.shape, lambda i: (0, 0, 0)),
        pl.BlockSpec(b0_row.shape, lambda i: (0, 0)),
        pl.BlockSpec(w1_blk.shape, lambda i: (0, 0, 0)),
        pl.BlockSpec(b1_row.shape, lambda i: (0, 0)),
        pl.BlockSpec(w2_blk.shape, lambda i: (0, 0, 0)),
        pl.BlockSpec(b2_row.shape, lambda i: (0, 0)),
        pl.BlockSpec(wf_big.shape, lambda i: (0, 0)),
        pl.BlockSpec(bf_row.shape, lambda i: (0, 0)),
    ]
    out_specs = pl.BlockSpec((1, bt, style_dim), lambda i: (i, 0, 0))
    out_shape = jax.ShapeDtypeStruct((g, bt, style_dim), jnp.float32)
    scratch_shapes = [
        pltpu.VMEM((m0 + bt, 2 * n0), jnp.bfloat16),    # paired layer-1 input
        pltpu.VMEM((m1 + 2 * bt, n1), jnp.float32),     # plain  layer-2 input
        pltpu.VMEM((bt, n2), jnp.float32),              # per-image pooled rows
    ]

    operands = [x_pack, w0_blk, b0_row, w1_blk, b1_row, w2_blk, b2_row,
                wf_big, bf_row]
    flops = g * (2 * m0 * (2 * k0) * (2 * n0) * w0_blk.shape[0]
                 + 2 * m1 * (2 * n0) * n1 * 2
                 + 2 * h2 * n1 * n2 * 4 * bt
                 + 2 * bt * n2 * style_dim)
    bytes_accessed = int(sum(op.size * op.dtype.itemsize for op in operands)
                         + g * bt * style_dim * 4)

    fused = pl.pallas_call(
        kernel,
        grid=(g,),
        in_specs=in_specs,
        out_specs=out_specs,
        out_shape=out_shape,
        scratch_shapes=scratch_shapes,
        compiler_params=pltpu.CompilerParams(
            dimension_semantics=("parallel",),          # batch groups across TCs
            vmem_limit_bytes=32 * 1024 * 1024),         # explicit, v7x-safe
        cost_estimate=pl.CostEstimate(flops=flops, transcendentals=0,
                                      bytes_accessed=bytes_accessed),
    )
    res = fused(*operands)                              # (g, bt, style_dim)
    res = res.reshape(g * bt, style_dim)[:n_orig]
    return res.reshape(n_orig, style_dim, 1, 1)


# --------------------------- parameter construction ---------------------------

def init_style_encoder_params(key, in_channels=3, dim=8, n_downsample=2,
                              style_dim=8):
    """Deterministic synthetic params matching nn.Conv2d default init shapes."""
    def conv_init(k, cout, cin, ksz):
        k1, k2 = jax.random.split(k)
        bound = 1.0 / np.sqrt(cin * ksz * ksz)
        w = jax.random.uniform(k1, (cout, cin, ksz, ksz), jnp.float32,
                               -bound, bound)
        b = jax.random.uniform(k2, (cout,), jnp.float32, -bound, bound)
        return w, b

    keys = jax.random.split(key, 3 + max(n_downsample - 2, 0) + 1)
    ki = 0
    layers = []
    layers.append((conv_init(keys[ki], dim, in_channels, 7), 1, 3, "reflect", True))
    ki += 1
    d = dim
    for _ in range(2):
        layers.append((conv_init(keys[ki], d * 2, d, 4), 2, 1, "constant", True))
        ki += 1
        d *= 2
    for _ in range(n_downsample - 2):
        layers.append((conv_init(keys[ki], d, d, 4), 2, 1, "constant", True))
        ki += 1
    final = conv_init(keys[ki], style_dim, d, 1)
    return layers, final


# --------------------------------- reference -----------------------------------

def reference_forward(x, layers, final):
    for (w, b), stride, pad, pad_mode, relu in layers:
        if pad_mode == "reflect":
            x = jnp.pad(x, ((0, 0), (0, 0), (pad, pad), (pad, pad)),
                        mode="reflect")
            p = 0
        else:
            p = pad
        x = jax.lax.conv_general_dilated(
            x, w, (stride, stride), [(p, p), (p, p)],
            dimension_numbers=("NCHW", "OIHW", "NCHW"))
        x = x + b.reshape(1, -1, 1, 1)
        if relu:
            x = jnp.maximum(x, 0.0)
    x = jnp.mean(x, axis=(2, 3), keepdims=True)
    wf, bf = final
    x = jax.lax.conv_general_dilated(
        x, wf, (1, 1), [(0, 0), (0, 0)],
        dimension_numbers=("NCHW", "OIHW", "NCHW")) + bf.reshape(1, -1, 1, 1)
    return x


# ----------------------------------- main --------------------------------------

if __name__ == "__main__":
    key = jax.random.PRNGKey(0)
    k_x, k_p = jax.random.split(key)

    # Small, module-consistent shapes: batch=2, in_channels=3, spatial=16,
    # base dim=8, n_downsample=2, style_dim=8.
    x = jax.random.normal(k_x, (2, 3, 16, 16), dtype=jnp.float32)
    layers, final = init_style_encoder_params(
        k_p, in_channels=3, dim=8, n_downsample=2, style_dim=8)

    out = jax.block_until_ready(style_encoder_forward(x, layers, final))
    assert out.shape == (2, 8, 1, 1), out.shape

    ref = jax.block_until_ready(reference_forward(x, layers, final))
    # bf16 MXU operands force the loose tolerance; the reference path is f32.
    assert np.allclose(np.asarray(out), np.asarray(ref),
                       rtol=2e-2, atol=2e-2), "mismatch vs reference"

    print("KERNEL_OK")
</pallas_src>

<mosaic_0001>
module attributes {stable_mosaic.version = 11 : i64} {
  func.func @kernel(%arg0: i32, %arg1: memref<32x132xbf16, #tpu.memory_space<vmem>>, %arg2: memref<4x132x256xbf16, #tpu.memory_space<vmem>>, %arg3: memref<1x256xf32, #tpu.memory_space<vmem>>, %arg4: memref<2x256x128xbf16, #tpu.memory_space<vmem>>, %arg5: memref<1x128xf32, #tpu.memory_space<vmem>>, %arg6: memref<4x128x128xbf16, #tpu.memory_space<vmem>>, %arg7: memref<1x128xf32, #tpu.memory_space<vmem>>, %arg8: memref<128x8xf32, #tpu.memory_space<vmem>>, %arg9: memref<1x8xf32, #tpu.memory_space<vmem>>, %arg10: memref<1x2x8xf32, #tpu.memory_space<vmem>>, %arg11: memref<18x256xbf16, #tpu.memory_space<vmem>>, %arg12: memref<20x128xf32, #tpu.memory_space<vmem>>, %arg13: memref<2x128xf32, #tpu.memory_space<vmem>>) attributes {dimension_semantics = [#tpu.dimension_semantics<parallel>], iteration_bounds = array<i64: 1>, scalar_prefetch = 0 : i64, scratch_operands = 3 : i64, tpu.core_type = #tpu.core_type<tc>, window_params = [{transform_indices = @transform_0, window_bounds = array<i64: 32, 132>}, {pipeline_mode = #tpu.pipeline_mode<synchronous>, transform_indices = @transform_1, window_bounds = array<i64: 4, 132, 256>}, {pipeline_mode = #tpu.pipeline_mode<synchronous>, transform_indices = @transform_2, window_bounds = array<i64: 1, 256>}, {pipeline_mode = #tpu.pipeline_mode<synchronous>, transform_indices = @transform_3, window_bounds = array<i64: 2, 256, 128>}, {pipeline_mode = #tpu.pipeline_mode<synchronous>, transform_indices = @transform_4, window_bounds = array<i64: 1, 128>}, {pipeline_mode = #tpu.pipeline_mode<synchronous>, transform_indices = @transform_5, window_bounds = array<i64: 4, 128, 128>}, {pipeline_mode = #tpu.pipeline_mode<synchronous>, transform_indices = @transform_6, window_bounds = array<i64: 1, 128>}, {pipeline_mode = #tpu.pipeline_mode<synchronous>, transform_indices = @transform_7, window_bounds = array<i64: 128, 8>}, {pipeline_mode = #tpu.pipeline_mode<synchronous>, transform_indices = @transform_8, window_bounds = array<i64: 1, 8>}, {transform_indices = @transform_9, window_bounds = array<i64: 1, 2, 8>}]} {
    %c0 = arith.constant 0 : index
    %c0_0 = arith.constant 0 : index
    %0 = vector.load %arg1[%c0, %c0_0] : memref<32x132xbf16, #tpu.memory_space<vmem>>, vector<16x132xbf16>
    %c0_1 = arith.constant 0 : index
    %c0_2 = arith.constant 0 : index
    %c0_3 = arith.constant 0 : index
    %1 = vector.load %arg2[%c0_1, %c0_2, %c0_3] : memref<4x132x256xbf16, #tpu.memory_space<vmem>>, vector<1x132x256xbf16>
    %2 = vector.shape_cast %1 : vector<1x132x256xbf16> to vector<132x256xbf16>
    %cst = arith.constant dense<0.000000e+00> : vector<16x256xf32>
    %3 = tpu.matmul %0, %2, %cst {dimension_numbers = #tpu.dot_dimension_numbers<[1], [0], [0], [1], [0, 0, 1, 1], [], []>} : vector<16x132xbf16>, vector<132x256xbf16>, vector<16x256xf32> -> vector<16x256xf32>
    %c2 = arith.constant 2 : index
    %c0_4 = arith.constant 0 : index
    %4 = vector.load %arg1[%c2, %c0_4] : memref<32x132xbf16, #tpu.memory_space<vmem>>, vector<16x132xbf16>
    %c1 = arith.constant 1 : index
    %c0_5 = arith.constant 0 : index
    %c0_6 = arith.constant 0 : index
    %5 = vector.load %arg2[%c1, %c0_5, %c0_6] : memref<4x132x256xbf16, #tpu.memory_space<vmem>>, vector<1x132x256xbf16>
    %6 = vector.shape_cast %5 : vector<1x132x256xbf16> to vector<132x256xbf16>
    %cst_7 = arith.constant dense<0.000000e+00> : vector<16x256xf32>
    %7 = tpu.matmul %4, %6, %cst_7 {dimension_numbers = #tpu.dot_dimension_numbers<[1], [0], [0], [1], [0, 0, 1, 1], [], []>} : vector<16x132xbf16>, vector<132x256xbf16>, vector<16x256xf32> -> vector<16x256xf32>
    %8 = arith.addf %3, %7 : vector<16x256xf32>
    %c4 = arith.constant 4 : index
    %c0_8 = arith.constant 0 : index
    %9 = vector.load %arg1[%c4, %c0_8] : memref<32x132xbf16, #tpu.memory_space<vmem>>, vector<16x132xbf16>
    %c2_9 = arith.constant 2 : index
    %c0_10 = arith.constant 0 : index
    %c0_11 = arith.constant 0 : index
    %10 = vector.load %arg2[%c2_9, %c0_10, %c0_11] : memref<4x132x256xbf16, #tpu.memory_space<vmem>>, vector<1x132x256xbf16>
    %11 = vector.shape_cast %10 : vector<1x132x256xbf16> to vector<132x256xbf16>
    %cst_12 = arith.constant dense<0.000000e+00> : vector<16x256xf32>
    %12 = tpu.matmul %9, %11, %cst_12 {dimension_numbers = #tpu.dot_dimension_numbers<[1], [0], [0], [1], [0, 0, 1, 1], [], []>} : vector<16x132xbf16>, vector<132x256xbf16>, vector<16x256xf32> -> vector<16x256xf32>
    %13 = arith.addf %8, %12 : vector<16x256xf32>
    %c6 = arith.constant 6 : index
    %c0_13 = arith.constant 0 : index
    %14 = vector.load %arg1[%c6, %c0_13] : memref<32x132xbf16, #tpu.memory_space<vmem>>, vector<16x132xbf16>
    %c3 = arith.constant 3 : index
    %c0_14 = arith.constant 0 : index
    %c0_15 = arith.constant 0 : index
    %15 = vector.load %arg2[%c3, %c0_14, %c0_15] : memref<4x132x256xbf16, #tpu.memory_space<vmem>>, vector<1x132x256xbf16>
    %16 = vector.shape_cast %15 : vector<1x132x256xbf16> to vector<132x256xbf16>
    %cst_16 = arith.constant dense<0.000000e+00> : vector<16x256xf32>
    %17 = tpu.matmul %14, %16, %cst_16 {dimension_numbers = #tpu.dot_dimension_numbers<[1], [0], [0], [1], [0, 0, 1, 1], [], []>} : vector<16x132xbf16>, vector<132x256xbf16>, vector<16x256xf32> -> vector<16x256xf32>
    %18 = arith.addf %13, %17 : vector<16x256xf32>
    %c0_17 = arith.constant 0 : index
    %c0_18 = arith.constant 0 : index
    %19 = vector.load %arg3[%c0_17, %c0_18] : memref<1x256xf32, #tpu.memory_space<vmem>>, vector<1x256xf32>
    %20 = vector.broadcast %19 : vector<1x256xf32> to vector<16x256xf32>
    %21 = arith.addf %18, %20 : vector<16x256xf32>
    %cst_19 = arith.constant 0.000000e+00 : f32
    %22 = vector.broadcast %cst_19 : f32 to vector<16x256xf32>
    %23 = arith.maximumf %21, %22 : vector<16x256xf32>
    %24 = arith.truncf %23 : vector<16x256xf32> to vector<16x256xbf16>
    %25 = vector.extract_strided_slice %24 {offsets = [0, 0], sizes = [16, 128], strides = [1, 1]} : vector<16x256xbf16> to vector<16x128xbf16>
    %26 = vector.extract_strided_slice %24 {offsets = [0, 128], sizes = [16, 128], strides = [1, 1]} : vector<16x256xbf16> to vector<16x128xbf16>
    %c0_20 = arith.constant 0 : index
    %c128 = arith.constant 128 : index
    %27 = vector.load %arg11[%c0_20, %c128] : memref<18x256xbf16, #tpu.memory_space<vmem>>, vector<16x128xbf16>
    tpu.vector_store %arg11[%c0_20, %c128], %25 {strides = array<i32>} : memref<18x256xbf16, #tpu.memory_space<vmem>>, vector<16x128xbf16>,
    %c2_21 = arith.constant 2 : index
    %c0_22 = arith.constant 0 : index
    %28 = vector.load %arg11[%c2_21, %c0_22] : memref<18x256xbf16, #tpu.memory_space<vmem>>, vector<16x128xbf16>
    tpu.vector_store %arg11[%c2_21, %c0_22], %26 {strides = array<i32>} : memref<18x256xbf16, #tpu.memory_space<vmem>>, vector<16x128xbf16>,
    %cst_23 = arith.constant 0.000000e+00 : bf16
    %29 = vector.broadcast %cst_23 : bf16 to vector<2x128xbf16>
    %c0_24 = arith.constant 0 : index
    %c0_25 = arith.constant 0 : index
    %30 = vector.load %arg11[%c0_24, %c0_25] : memref<18x256xbf16, #tpu.memory_space<vmem>>, vector<2x128xbf16>
    tpu.vector_store %arg11[%c0_24, %c0_25], %29 {strides = array<i32>} : memref<18x256xbf16, #tpu.memory_space<vmem>>, vector<2x128xbf16>,
    %cst_26 = arith.constant 0.000000e+00 : bf16
    %31 = vector.broadcast %cst_26 : bf16 to vector<2x128xbf16>
    %c16 = arith.constant 16 : index
    %c128_27 = arith.constant 128 : index
    %32 = vector.load %arg11[%c16, %c128_27] : memref<18x256xbf16, #tpu.memory_space<vmem>>, vector<2x128xbf16>
    tpu.vector_store %arg11[%c16, %c128_27], %31 {strides = array<i32>} : memref<18x256xbf16, #tpu.memory_space<vmem>>, vector<2x128xbf16>,
    %c0_28 = arith.constant 0 : index
    %c0_29 = arith.constant 0 : index
    %33 = vector.load %arg11[%c0_28, %c0_29] : memref<18x256xbf16, #tpu.memory_space<vmem>>, vector<16x256xbf16>
    %c0_30 = arith.constant 0 : index
    %c0_31 = arith.constant 0 : index
    %c0_32 = arith.constant 0 : index
    %34 = vector.load %arg4[%c0_30, %c0_31, %c0_32] : memref<2x256x128xbf16, #tpu.memory_space<vmem>>, vector<1x256x128xbf16>
    %35 = vector.shape_cast %34 : vector<1x256x128xbf16> to vector<256x128xbf16>
    %cst_33 = arith.constant dense<0.000000e+00> : vector<16x128xf32>
    %36 = tpu.matmul %33, %35, %cst_33 {dimension_numbers = #tpu.dot_dimension_numbers<[1], [0], [0], [1], [0, 0, 1, 1], [], []>} : vector<16x256xbf16>, vector<256x128xbf16>, vector<16x128xf32> -> vector<16x128xf32>
    %c2_34 = arith.constant 2 : index
    %c0_35 = arith.constant 0 : index
    %37 = vector.load %arg11[%c2_34, %c0_35] : memref<18x256xbf16, #tpu.memory_space<vmem>>, vector<16x256xbf16>
    %c1_36 = arith.constant 1 : index
    %c0_37 = arith.constant 0 : index
    %c0_38 = arith.constant 0 : index
    %38 = vector.load %arg4[%c1_36, %c0_37, %c0_38] : memref<2x256x128xbf16, #tpu.memory_space<vmem>>, vector<1x256x128xbf16>
    %39 = vector.shape_cast %38 : vector<1x256x128xbf16> to vector<256x128xbf16>
    %cst_39 = arith.constant dense<0.000000e+00> : vector<16x128xf32>
    %40 = tpu.matmul %37, %39, %cst_39 {dimension_numbers = #tpu.dot_dimension_numbers<[1], [0], [0], [1], [0, 0, 1, 1], [], []>} : vector<16x256xbf16>, vector<256x128xbf16>, vector<16x128xf32> -> vector<16x128xf32>
    %41 = arith.addf %36, %40 : vector<16x128xf32>
    %c0_40 = arith.constant 0 : index
    %c0_41 = arith.constant 0 : index
    %42 = vector.load %arg5[%c0_40, %c0_41] : memref<1x128xf32, #tpu.memory_space<vmem>>, vector<1x128xf32>
    %43 = vector.broadcast %42 : vector<1x128xf32> to vector<16x128xf32>
    %44 = arith.addf %41, %43 : vector<16x128xf32>
    %cst_42 = arith.constant 0.000000e+00 : f32
    %45 = vector.broadcast %cst_42 : f32 to vector<16x128xf32>
    %46 = arith.maximumf %44, %45 : vector<16x128xf32>
    %c2_43 = arith.constant 2 : index
    %c0_44 = arith.constant 0 : index
    %47 = vector.load %arg12[%c2_43, %c0_44] : memref<20x128xf32, #tpu.memory_space<vmem>>, vector<16x128xf32>
    tpu.vector_store %arg12[%c2_43, %c0_44], %46 {strides = array<i32>} : memref<20x128xf32, #tpu.memory_space<vmem>>, vector<16x128xf32>,
    %cst_45 = arith.constant 0.000000e+00 : f32
    %48 = vector.broadcast %cst_45 : f32 to vector<2x128xf32>
    %c0_46 = arith.constant 0 : index
    %c0_47 = arith.constant 0 : index
    %49 = vector.load %arg12[%c0_46, %c0_47] : memref<20x128xf32, #tpu.memory_space<vmem>>, vector<2x128xf32>
    tpu.vector_store %arg12[%c0_46, %c0_47], %48 {strides = array<i32>} : memref<20x128xf32, #tpu.memory_space<vmem>>, vector<2x128xf32>,
    %cst_48 = arith.constant 0.000000e+00 : f32
    %50 = vector.broadcast %cst_48 : f32 to vector<2x128xf32>
    %c18 = arith.constant 18 : index
    %c0_49 = arith.constant 0 : index
    %51 = vector.load %arg12[%c18, %c0_49] : memref<20x128xf32, #tpu.memory_space<vmem>>, vector<2x128xf32>
    tpu.vector_store %arg12[%c18, %c0_49], %50 {strides = array<i32>} : memref<20x128xf32, #tpu.memory_space<vmem>>, vector<2x128xf32>,
    %c0_50 = arith.constant 0 : index
    %c0_51 = arith.constant 0 : index
    %52 = tpu.strided_load %arg12[%c0_50, %c0_51] {strides = array<i32: 4, 1>} : memref<20x128xf32, #tpu.memory_space<vmem>>, vector<4x128xf32>
    %53 = arith.truncf %52 : vector<4x128xf32> to vector<4x128xbf16>
    %c0_52 = arith.constant 0 : index
    %c0_53 = arith.constant 0 : index
    %c0_54 = arith.constant 0 : index
    %54 = vector.load %arg6[%c0_52, %c0_53, %c0_54] : memref<4x128x128xbf16, #tpu.memory_space<vmem>>, vector<1x128x128xbf16>
    %55 = vector.shape_cast %54 : vector<1x128x128xbf16> to vector<128x128xbf16>
    %cst_55 = arith.constant dense<0.000000e+00> : vector<4x128xf32>
    %56 = tpu.matmul %53, %55, %cst_55 {dimension_numbers = #tpu.dot_dimension_numbers<[1], [0], [0], [1], [0, 0, 1, 1], [], []>} : vector<4x128xbf16>, vector<128x128xbf16>, vector<4x128xf32> -> vector<4x128xf32>
    %c2_56 = arith.constant 2 : index
    %c0_57 = arith.constant 0 : index
    %57 = tpu.strided_load %arg12[%c2_56, %c0_57] {strides = array<i32: 4, 1>} : memref<20x128xf32, #tpu.memory_space<vmem>>, vector<4x128xf32>
    %58 = arith.truncf %57 : vector<4x128xf32> to vector<4x128xbf16>
    %c1_58 = arith.constant 1 : index
    %c0_59 = arith.constant 0 : index
    %c0_60 = arith.constant 0 : index
    %59 = vector.load %arg6[%c1_58, %c0_59, %c0_60] : memref<4x128x128xbf16, #tpu.memory_space<vmem>>, vector<1x128x128xbf16>
    %60 = vector.shape_cast %59 : vector<1x128x128xbf16> to vector<128x128xbf16>
    %cst_61 = arith.constant dense<0.000000e+00> : vector<4x128xf32>
    %61 = tpu.matmul %58, %60, %cst_61 {dimension_numbers = #tpu.dot_dimension_numbers<[1], [0], [0], [1], [0, 0, 1, 1], [], []>} : vector<4x128xbf16>, vector<128x128xbf16>, vector<4x128xf32> -> vector<4x128xf32>
    %62 = arith.addf %56, %61 : vector<4x128xf32>
    %c4_62 = arith.constant 4 : index
    %c0_63 = arith.constant 0 : index
    %63 = tpu.strided_load %arg12[%c4_62, %c0_63] {strides = array<i32: 4, 1>} : memref<20x128xf32, #tpu.memory_space<vmem>>, vector<4x128xf32>
    %64 = arith.truncf %63 : vector<4x128xf32> to vector<4x128xbf16>
    %c2_64 = arith.constant 2 : index
    %c0_65 = arith.constant 0 : index
    %c0_66 = arith.constant 0 : index
    %65 = vector.load %arg6[%c2_64, %c0_65, %c0_66] : memref<4x128x128xbf16, #tpu.memory_space<vmem>>, vector<1x128x128xbf16>
    %66 = vector.shape_cast %65 : vector<1x128x128xbf16> to vector<128x128xbf16>
    %cst_67 = arith.constant dense<0.000000e+00> : vector<4x128xf32>
    %67 = tpu.matmul %64, %66, %cst_67 {dimension_numbers = #tpu.dot_dimension_numbers<[1], [0], [0], [1], [0, 0, 1, 1], [], []>} : vector<4x128xbf16>, vector<128x128xbf16>, vector<4x128xf32> -> vector<4x128xf32>
    %68 = arith.addf %62, %67 : vector<4x128xf32>
    %c6_68 = arith.constant 6 : index
    %c0_69 = arith.constant 0 : index
    %69 = tpu.strided_load %arg12[%c6_68, %c0_69] {strides = array<i32: 4, 1>} : memref<20x128xf32, #tpu.memory_space<vmem>>, vector<4x128xf32>
    %70 = arith.truncf %69 : vector<4x128xf32> to vector<4x128xbf16>
    %c3_70 = arith.constant 3 : index
    %c0_71 = arith.constant 0 : index
    %c0_72 = arith.constant 0 : index
    %71 = vector.load %arg6[%c3_70, %c0_71, %c0_72] : memref<4x128x128xbf16, #tpu.memory_space<vmem>>, vector<1x128x128xbf16>
    %72 = vector.shape_cast %71 : vector<1x128x128xbf16> to vector<128x128xbf16>
    %cst_73 = arith.constant dense<0.000000e+00> : vector<4x128xf32>
    %73 = tpu.matmul %70, %72, %cst_73 {dimension_numbers = #tpu.dot_dimension_numbers<[1], [0], [0], [1], [0, 0, 1, 1], [], []>} : vector<4x128xbf16>, vector<128x128xbf16>, vector<4x128xf32> -> vector<4x128xf32>
    %74 = arith.addf %68, %73 : vector<4x128xf32>
    %c0_74 = arith.constant 0 : index
    %c0_75 = arith.constant 0 : index
    %75 = vector.load %arg7[%c0_74, %c0_75] : memref<1x128xf32, #tpu.memory_space<vmem>>, vector<1x128xf32>
    %76 = vector.broadcast %75 : vector<1x128xf32> to vector<4x128xf32>
    %77 = arith.addf %74, %76 : vector<4x128xf32>
    %cst_76 = arith.constant 0.000000e+00 : f32
    %78 = vector.broadcast %cst_76 : f32 to vector<4x128xf32>
    %79 = arith.maximumf %77, %78 : vector<4x128xf32>
    %cst_77 = arith.constant dense<0.000000e+00> : vector<128xf32>
    %80 = vector.multi_reduction <add>, %79, %cst_77 [0] : vector<4x128xf32> to vector<128xf32>
    %81 = vector.shape_cast %80 : vector<128xf32> to vector<1x128xf32>
    %c0_78 = arith.constant 0 : index
    %c0_79 = arith.constant 0 : index
    %82 = vector.load %arg13[%c0_78, %c0_79] : memref<2x128xf32, #tpu.memory_space<vmem>>, vector<1x128xf32>
    tpu.vector_store %arg13[%c0_78, %c0_79], %81 {strides = array<i32>} : memref<2x128xf32, #tpu.memory_space<vmem>>, vector<1x128xf32>,
    %c1_80 = arith.constant 1 : index
    %c0_81 = arith.constant 0 : index
    %83 = tpu.strided_load %arg12[%c1_80, %c0_81] {strides = array<i32: 4, 1>} : memref<20x128xf32, #tpu.memory_space<vmem>>, vector<4x128xf32>
    %84 = arith.truncf %83 : vector<4x128xf32> to vector<4x128xbf16>
    %c0_82 = arith.constant 0 : index
    %c0_83 = arith.constant 0 : index
    %c0_84 = arith.constant 0 : index
    %85 = vector.load %arg6[%c0_82, %c0_83, %c0_84] : memref<4x128x128xbf16, #tpu.memory_space<vmem>>, vector<1x128x128xbf16>
    %86 = vector.shape_cast %85 : vector<1x128x128xbf16> to vector<128x128xbf16>
    %cst_85 = arith.constant dense<0.000000e+00> : vector<4x128xf32>
    %87 = tpu.matmul %84, %86, %cst_85 {dimension_numbers = #tpu.dot_dimension_numbers<[1], [0], [0], [1], [0, 0, 1, 1], [], []>} : vector<4x128xbf16>, vector<128x128xbf16>, vector<4x128xf32> -> vector<4x128xf32>
    %c3_86 = arith.constant 3 : index
    %c0_87 = arith.constant 0 : index
    %88 = tpu.strided_load %arg12[%c3_86, %c0_87] {strides = array<i32: 4, 1>} : memref<20x128xf32, #tpu.memory_space<vmem>>, vector<4x128xf32>
    %89 = arith.truncf %88 : vector<4x128xf32> to vector<4x128xbf16>
    %c1_88 = arith.constant 1 : index
    %c0_89 = arith.constant 0 : index
    %c0_90 = arith.constant 0 : index
    %90 = vector.load %arg6[%c1_88, %c0_89, %c0_90] : memref<4x128x128xbf16, #tpu.memory_space<vmem>>, vector<1x128x128xbf16>
    %91 = vector.shape_cast %90 : vector<1x128x128xbf16> to vector<128x128xbf16>
    %cst_91 = arith.constant dense<0.000000e+00> : vector<4x128xf32>
    %92 = tpu.matmul %89, %91, %cst_91 {dimension_numbers = #tpu.dot_dimension_numbers<[1], [0], [0], [1], [0, 0, 1, 1], [], []>} : vector<4x128xbf16>, vector<128x128xbf16>, vector<4x128xf32> -> vector<4x128xf32>
    %93 = arith.addf %87, %92 : vector<4x128xf32>
    %c5 = arith.constant 5 : index
    %c0_92 = arith.constant 0 : index
    %94 = tpu.strided_load %arg12[%c5, %c0_92] {strides = array<i32: 4, 1>} : memref<20x128xf32, #tpu.memory_space<vmem>>, vector<4x128xf32>
    %95 = arith.truncf %94 : vector<4x128xf32> to vector<4x128xbf16>
    %c2_93 = arith.constant 2 : index
    %c0_94 = arith.constant 0 : index
    %c0_95 = arith.constant 0 : index
    %96 = vector.load %arg6[%c2_93, %c0_94, %c0_95] : memref<4x128x128xbf16, #tpu.memory_space<vmem>>, vector<1x128x128xbf16>
    %97 = vector.shape_cast %96 : vector<1x128x128xbf16> to vector<128x128xbf16>
    %cst_96 = arith.constant dense<0.000000e+00> : vector<4x128xf32>
    %98 = tpu.matmul %95, %97, %cst_96 {dimension_numbers = #tpu.dot_dimension_numbers<[1], [0], [0], [1], [0, 0, 1, 1], [], []>} : vector<4x128xbf16>, vector<128x128xbf16>, vector<4x128xf32> -> vector<4x128xf32>
    %99 = arith.addf %93, %98 : vector<4x128xf32>
    %c7 = arith.constant 7 : index
    %c0_97 = arith.constant 0 : index
    %100 = tpu.strided_load %arg12[%c7, %c0_97] {strides = array<i32: 4, 1>} : memref<20x128xf32, #tpu.memory_space<vmem>>, vector<4x128xf32>
    %101 = arith.truncf %100 : vector<4x128xf32> to vector<4x128xbf16>
    %c3_98 = arith.constant 3 : index
    %c0_99 = arith.constant 0 : index
    %c0_100 = arith.constant 0 : index
    %102 = vector.load %arg6[%c3_98, %c0_99, %c0_100] : memref<4x128x128xbf16, #tpu.memory_space<vmem>>, vector<1x128x128xbf16>
    %103 = vector.shape_cast %102 : vector<1x128x128xbf16> to vector<128x128xbf16>
    %cst_101 = arith.constant dense<0.000000e+00> : vector<4x128xf32>
    %104 = tpu.matmul %101, %103, %cst_101 {dimension_numbers = #tpu.dot_dimension_numbers<[1], [0], [0], [1], [0, 0, 1, 1], [], []>} : vector<4x128xbf16>, vector<128x128xbf16>, vector<4x128xf32> -> vector<4x128xf32>
    %105 = arith.addf %99, %104 : vector<4x128xf32>
    %c0_102 = arith.constant 0 : index
    %c0_103 = arith.constant 0 : index
    %106 = vector.load %arg7[%c0_102, %c0_103] : memref<1x128xf32, #tpu.memory_space<vmem>>, vector<1x128xf32>
    %107 = vector.broadcast %106 : vector<1x128xf32> to vector<4x128xf32>
    %108 = arith.addf %105, %107 : vector<4x128xf32>
    %cst_104 = arith.constant 0.000000e+00 : f32
    %109 = vector.broadcast %cst_104 : f32 to vector<4x128xf32>
    %110 = arith.maximumf %108, %109 : vector<4x128xf32>
    %cst_105 = arith.constant dense<0.000000e+00> : vector<128xf32>
    %111 = vector.multi_reduction <add>, %110, %cst_105 [0] : vector<4x128xf32> to vector<128xf32>
    %112 = vector.shape_cast %111 : vector<128xf32> to vector<1x128xf32>
    %c1_106 = arith.constant 1 : index
    %c0_107 = arith.constant 0 : index
    %113 = vector.load %arg13[%c1_106, %c0_107] : memref<2x128xf32, #tpu.memory_space<vmem>>, vector<1x128xf32>
    tpu.vector_store %arg13[%c1_106, %c0_107], %112 {strides = array<i32>} : memref<2x128xf32, #tpu.memory_space<vmem>>, vector<1x128xf32>,
    %c0_108 = arith.constant 0 : index
    %c0_109 = arith.constant 0 : index
    %114 = vector.load %arg13[%c0_108, %c0_109] : memref<2x128xf32, #tpu.memory_space<vmem>>, vector<2x128xf32>
    %c0_110 = arith.constant 0 : index
    %c0_111 = arith.constant 0 : index
    %115 = vector.load %arg8[%c0_110, %c0_111] : memref<128x8xf32, #tpu.memory_space<vmem>>, vector<128x8xf32>
    %cst_112 = arith.constant dense<0.000000e+00> : vector<2x8xf32>
    %116 = tpu.matmul %114, %115, %cst_112 {dimension_numbers = #tpu.dot_dimension_numbers<[1], [0], [0], [1], [0, 0, 1, 1], [], []>} : vector<2x128xf32>, vector<128x8xf32>, vector<2x8xf32> -> vector<2x8xf32>
    %c0_113 = arith.constant 0 : index
    %c0_114 = arith.constant 0 : index
    %117 = vector.load %arg9[%c0_113, %c0_114] : memref<1x8xf32, #tpu.memory_space<vmem>>, vector<1x8xf32>
    %118 = vector.broadcast %117 : vector<1x8xf32> to vector<2x8xf32>
    %119 = arith.addf %116, %118 : vector<2x8xf32>
    %c0_115 = arith.constant 0 : index
    %c0_116 = arith.constant 0 : index
    %c0_117 = arith.constant 0 : index
    %120 = vector.load %arg10[%c0_115, %c0_116, %c0_117] : memref<1x2x8xf32, #tpu.memory_space<vmem>>, vector<1x2x8xf32>
    %121 = vector.shape_cast %120 : vector<1x2x8xf32> to vector<2x8xf32>
    %122 = vector.shape_cast %119 : vector<2x8xf32> to vector<1x2x8xf32>
    tpu.vector_store %arg10[%c0_115, %c0_116, %c0_117], %122 {strides = array<i32>} : memref<1x2x8xf32, #tpu.memory_space<vmem>>, vector<1x2x8xf32>,
    return
  }
  func.func @transform_0(%arg0: i32) -> (i32, i32) {
    %c0_i32 = arith.constant 0 : i32
    %c0_i32_0 = arith.constant 0 : i32
    return %arg0, %c0_i32 : i32, i32
  }
  func.func @transform_1(%arg0: i32) -> (i32, i32, i32) {
    %c0_i32 = arith.constant 0 : i32
    %c0_i32_0 = arith.constant 0 : i32
    %c0_i32_1 = arith.constant 0 : i32
    %c0_i32_2 = arith.constant 0 : i32
    return %c0_i32, %c0_i32_0, %c0_i32_1 : i32, i32, i32
  }
  func.func @transform_2(%arg0: i32) -> (i32, i32) {
    %c0_i32 = arith.constant 0 : i32
    %c0_i32_0 = arith.constant 0 : i32
    %c0_i32_1 = arith.constant 0 : i32
    return %c0_i32, %c0_i32_0 : i32, i32
  }
  func.func @transform_3(%arg0: i32) -> (i32, i32, i32) {
    %c0_i32 = arith.constant 0 : i32
    %c0_i32_0 = arith.constant 0 : i32
    %c0_i32_1 = arith.constant 0 : i32
    %c0_i32_2 = arith.constant 0 : i32
    return %c0_i32, %c0_i32_0, %c0_i32_1 : i32, i32, i32
  }
  func.func @transform_4(%arg0: i32) -> (i32, i32) {
    %c0_i32 = arith.constant 0 : i32
    %c0_i32_0 = arith.constant 0 : i32
    %c0_i32_1 = arith.constant 0 : i32
    return %c0_i32, %c0_i32_0 : i32, i32
  }
  func.func @transform_5(%arg0: i32) -> (i32, i32, i32) {
    %c0_i32 = arith.constant 0 : i32
    %c0_i32_0 = arith.constant 0 : i32
    %c0_i32_1 = arith.constant 0 : i32
    %c0_i32_2 = arith.constant 0 : i32
    return %c0_i32, %c0_i32_0, %c0_i32_1 : i32, i32, i32
  }
  func.func @transform_6(%arg0: i32) -> (i32, i32) {
    %c0_i32 = arith.constant 0 : i32
    %c0_i32_0 = arith.constant 0 : i32
    %c0_i32_1 = arith.constant 0 : i32
    return %c0_i32, %c0_i32_0 : i32, i32
  }
  func.func @transform_7(%arg0: i32) -> (i32, i32) {
    %c0_i32 = arith.constant 0 : i32
    %c0_i32_0 = arith.constant 0 : i32
    %c0_i32_1 = arith.constant 0 : i32
    return %c0_i32, %c0_i32_0 : i32, i32
  }
  func.func @transform_8(%arg0: i32) -> (i32, i32) {
    %c0_i32 = arith.constant 0 : i32
    %c0_i32_0 = arith.constant 0 : i32
    %c0_i32_1 = arith.constant 0 : i32
    return %c0_i32, %c0_i32_0 : i32, i32
  }
  func.func @transform_9(%arg0: i32) -> (i32, i32, i32) {
    %c0_i32 = arith.constant 0 : i32
    %c0_i32_0 = arith.constant 0 : i32
    %c0_i32_1 = arith.constant 0 : i32
    return %arg0, %c0_i32, %c0_i32_0 : i32, i32, i32
  }
}

</mosaic_0001>

<llo_original>
// kernel: tpu_custom_call.1
$region0: #{tpu_custom_call.1}
  #allocation0 [shape = 'u32[]', space=smem, size = 0x4, offset = 0x4, fixed_abs, tag = 'smem constant byte address 0x4 - core index']
  #allocation1 [shape = 'u32[144,128]{1,0:T(1,128)}', space=vmem, size = 0x12000, scoped, tag = 'internal scratch']
  #allocation2 [shape = 'bf16[18,256]{1,0:T(8,128)(2,1)}', space=vmem, size = 0x3000, scoped, tag = 'scratch operand']
  #allocation3 [shape = 'f32[20,128]{1,0:T(8,128)}', space=vmem, size = 0x3000, scoped, tag = 'scratch operand']
  #allocation4 [shape = 'f32[2,128]{1,0:T(2,128)}', space=vmem, size = 0x400, scoped, tag = 'scratch operand']
  %s0 = inlined_call_operand.vmem [shape: bf16[32,132], index: 0, kind: input, shape index: {}]
  %s1 = inlined_call_operand.vmem [shape: bf16[4,132,256], index: 1, kind: input, shape index: {}]
  %s2 = inlined_call_operand.vmem [shape: f32[1,256], index: 2, kind: input, shape index: {}]
  %s3 = inlined_call_operand.vmem [shape: bf16[2,256,128], index: 3, kind: input, shape index: {}]
  %s4 = inlined_call_operand.vmem [shape: f32[1,128], index: 4, kind: input, shape index: {}]
  %s5 = inlined_call_operand.vmem [shape: bf16[4,128,128], index: 5, kind: input, shape index: {}]
  %s6 = inlined_call_operand.vmem [shape: f32[1,128], index: 6, kind: input, shape index: {}]
  %s7 = inlined_call_operand.vmem [shape: f32[128,8], index: 7, kind: input, shape index: {}]
  %s8 = inlined_call_operand.vmem [shape: f32[1,8], index: 8, kind: input, shape index: {}]
  %s9 = inlined_call_operand.hbm [shape: f32[1,2,8], index: 9, kind: output, shape index: {}]
  %s10 = sld [smem:[#allocation0]]
  $region46: #{tpu_custom_call.1} parent=0
    _
  %s12 = ssub.s32 1, %s10
  %s13 = scalar_select 0, %s12, %s10
  $region1: #{tpu_custom_call.1} parent=0
    #allocation5 [shape = 'u8[1024]{0}', space=vmem, size = 0x400, scoped, tag = 'output window, operand 0, single buffered']
    #allocation6 [shape = 's32[1]{0}', space=sflag, size = 0x4, scoped, tag = 'scoped memory for tpu_custom_call.1']
    %14 = vsyncpa [#allocation6], 0
    // Predicated region
    $region2: #{tpu_custom_call.1} parent=1 // pred_check
      _
    $region3: #{tpu_custom_call.1} parent=1 // pred_check_branch
      %16 = sbr.rel (0) target = $region5
    $region4: #{tpu_custom_call.1} parent=1 // pred_region
      _
    $region5: #{tpu_custom_call.1} parent=1 // pred_fallthru
      _
    // Predicated region
    $region6: #{tpu_custom_call.1} parent=1 // pred_check
      _
    $region7: #{tpu_custom_call.1} parent=1 // pred_check_branch
      %18 = sbr.rel (0) target = $region9
    $region8: #{tpu_custom_call.1} parent=1 // pred_region
      _
    $region9: #{tpu_custom_call.1} parent=1 // pred_fallthru
      _
    // Predicated region
    $region10: #{tpu_custom_call.1} parent=1 // pred_check
      _
    $region11: #{tpu_custom_call.1} parent=1 // pred_check_branch
      %20 = sbr.rel (0) target = $region13
    $region12: #{tpu_custom_call.1} parent=1 // pred_region
      _
    $region13: #{tpu_custom_call.1} parent=1 // pred_fallthru
      _
    // Predicated region
    $region14: #{tpu_custom_call.1} parent=1 // pred_check
      _
    $region15: #{tpu_custom_call.1} parent=1 // pred_check_branch
      %22 = sbr.rel (0) target = $region17
    $region16: #{tpu_custom_call.1} parent=1 // pred_region
      _
    $region17: #{tpu_custom_call.1} parent=1 // pred_fallthru
      _
    // Predicated region
    $region18: #{tpu_custom_call.1} parent=1 // pred_check
      _
    $region19: #{tpu_custom_call.1} parent=1 // pred_check_branch
      %24 = sbr.rel (0) target = $region21
    $region20: #{tpu_custom_call.1} parent=1 // pred_region
      _
    $region21: #{tpu_custom_call.1} parent=1 // pred_fallthru
      _
    // Predicated region
    $region22: #{tpu_custom_call.1} parent=1 // pred_check
      _
    $region23: #{tpu_custom_call.1} parent=1 // pred_check_branch
      %26 = sbr.rel (0) target = $region25
    $region24: #{tpu_custom_call.1} parent=1 // pred_region
      _
    $region25: #{tpu_custom_call.1} parent=1 // pred_fallthru
      _
    // Predicated region
    $region26: #{tpu_custom_call.1} parent=1 // pred_check
      _
    $region27: #{tpu_custom_call.1} parent=1 // pred_check_branch
      %28 = sbr.rel (0) target = $region29
    $region28: #{tpu_custom_call.1} parent=1 // pred_region
      _
    $region29: #{tpu_custom_call.1} parent=1 // pred_fallthru
      _
    // Predicated region
    $region30: #{tpu_custom_call.1} parent=1 // pred_check
      _
    $region31: #{tpu_custom_call.1} parent=1 // pred_check_branch
      %30 = sbr.rel (0) target = $region33
    $region32: #{tpu_custom_call.1} parent=1 // pred_region
      _
    $region33: #{tpu_custom_call.1} parent=1 // pred_fallthru
      _
    // Predicated region
    $region34: #{tpu_custom_call.1} parent=1 // pred_check
      _
    $region35: #{tpu_custom_call.1} parent=1 // pred_check_branch
      %32 = sbr.rel (0) target = $region37
    $region36: #{tpu_custom_call.1} parent=1 // pred_region
      _
    $region37: #{tpu_custom_call.1} parent=1 // pred_fallthru
      _
    %v34 = vld [vmem:[%s0] sm:$0xff]
    %v35 = vld [vmem:[%s0 + $0x8] sm:$0xff]
    %v36 = vld [vmem:[%s1] sm:$0xff]
    %v37 = vld [vmem:[%s1 + $0x8] sm:$0xff]
    %v38 = vld [vmem:[%s1 + $0x10] sm:$0xff]
    %v39 = vld [vmem:[%s1 + $0x18] sm:$0xff]
    %v40 = vld [vmem:[%s1 + $0x20] sm:$0xff]
    %v41 = vld [vmem:[%s1 + $0x28] sm:$0xff]
    %v42 = vld [vmem:[%s1 + $0x30] sm:$0xff]
    %v43 = vld [vmem:[%s1 + $0x38] sm:$0xff]
    %v44 = vld [vmem:[%s1 + $0x40] sm:$0xff]
    %v45 = vld [vmem:[%s1 + $0x48] sm:$0xff]
    %v46 = vld [vmem:[%s1 + $0x50] sm:$0xff]
    %v47 = vld [vmem:[%s1 + $0x58] sm:$0xff]
    %v48 = vld [vmem:[%s1 + $0x60] sm:$0xff]
    %v49 = vld [vmem:[%s1 + $0x68] sm:$0xff]
    %v50 = vld [vmem:[%s1 + $0x70] sm:$0xff]
    %v51 = vld [vmem:[%s1 + $0x78] sm:$0xff]
    %v52 = vld [vmem:[%s1 + $0x80] sm:$0x33]
    %v53 = vld [vmem:[%s0] sm:$0xee]
    %v54 = vld [vmem:[%s0 + $0x10] sm:$0x11]
    %s55 = scalar_lea.vmem %s1, 136
    %v56 = vld [vmem:[%s55] sm:$0xff]
    %v57 = vld [vmem:[%s55 + $0x8] sm:$0xff]
    %v58 = vld [vmem:[%s55 + $0x10] sm:$0xff]
    %v59 = vld [vmem:[%s55 + $0x18] sm:$0xff]
    %v60 = vld [vmem:[%s55 + $0x20] sm:$0xff]
    %v61 = vld [vmem:[%s55 + $0x28] sm:$0xff]
    %v62 = vld [vmem:[%s55 + $0x30] sm:$0xff]
    %v63 = vld [vmem:[%s55 + $0x38] sm:$0xff]
    %v64 = vld [vmem:[%s55 + $0x40] sm:$0xff]
    %v65 = vld [vmem:[%s55 + $0x48] sm:$0xff]
    %v66 = vld [vmem:[%s55 + $0x50] sm:$0xff]
    %v67 = vld [vmem:[%s55 + $0x58] sm:$0xff]
    %v68 = vld [vmem:[%s55 + $0x60] sm:$0xff]
    %v69 = vld [vmem:[%s55 + $0x68] sm:$0xff]
    %v70 = vld [vmem:[%s55 + $0x70] sm:$0xff]
    %v71 = vld [vmem:[%s55 + $0x78] sm:$0xff]
    %v72 = vld [vmem:[%s55 + $0x80] sm:$0x33]
    %v76 = vunpack.c.l.b16 %v53
    %v77 = vunpack.c.h.b16 %v53
    %v78 = vunpack.c.l.b16 %v35
    %v79 = vunpack.c.h.b16 %v35
    %v80 = vunpack.c.l.b16 %v54
    %v81 = vunpack.c.h.b16 %v54
    %v82 = vpack.c.b16 %v78, %v76
    %v83 = vpack.c.b16 %v79, %v77
    %v84 = vpack.c.b16 %v80, %v80
    %v85 = vpack.c.b16 %v81, %v81
    %vm86 = vcmask 1046528
    %v87 = vrot.slane %v82, 1
    %v88 = vrot.slane %v84, 1
    %v89 = vsel %vm86, %v87, %v88
    %v90 = vrot.slane %v83, 1
    %v91 = vrot.slane %v85, 1
    %v92 = vsel %vm86, %v90, %v91
    %v111 = vunpack.c.l.b16 %v56
    %v112 = vunpack.c.h.b16 %v56
    %v113 = vunpack.c.l.b16 %v57
    %v114 = vunpack.c.h.b16 %v57
    %v115 = vunpack.c.l.b16 %v58
    %v116 = vunpack.c.h.b16 %v58
    %v117 = vunpack.c.l.b16 %v59
    %v118 = vunpack.c.h.b16 %v59
    %v119 = vunpack.c.l.b16 %v60
    %v120 = vunpack.c.h.b16 %v60
    %v121 = vunpack.c.l.b16 %v61
    %v122 = vunpack.c.h.b16 %v61
    %v123 = vunpack.c.l.b16 %v62
    %v124 = vunpack.c.h.b16 %v62
    %v125 = vunpack.c.l.b16 %v63
    %v126 = vunpack.c.h.b16 %v63
    %v127 = vunpack.c.l.b16 %v64
    %v128 = vunpack.c.h.b16 %v64
    %v129 = vunpack.c.l.b16 %v65
    %v130 = vunpack.c.h.b16 %v65
    %v131 = vunpack.c.l.b16 %v66
    %v132 = vunpack.c.h.b16 %v66
    %v133 = vunpack.c.l.b16 %v67
    %v134 = vunpack.c.h.b16 %v67
    %v135 = vunpack.c.l.b16 %v68
    %v136 = vunpack.c.h.b16 %v68
    %v137 = vunpack.c.l.b16 %v69
    %v138 = vunpack.c.h.b16 %v69
    %v139 = vunpack.c.l.b16 %v70
    %v140 = vunpack.c.h.b16 %v70
    %v141 = vunpack.c.l.b16 %v71
    %v142 = vunpack.c.h.b16 %v71
    %v143 = vunpack.c.l.b16 %v72
    %v144 = vunpack.c.h.b16 %v72
    %v145 = vpack.c.b16 %v113, %v111
    %v146 = vpack.c.b16 %v114, %v112
    %v147 = vpack.c.b16 %v117, %v115
    %v148 = vpack.c.b16 %v118, %v116
    %v149 = vpack.c.b16 %v121, %v119
    %v150 = vpack.c.b16 %v122, %v120
    %v151 = vpack.c.b16 %v125, %v123
    %v152 = vpack.c.b16 %v126, %v124
    %v153 = vpack.c.b16 %v129, %v127
    %v154 = vpack.c.b16 %v130, %v128
    %v155 = vpack.c.b16 %v133, %v131
    %v156 = vpack.c.b16 %v134, %v132
    %v157 = vpack.c.b16 %v137, %v135
    %v158 = vpack.c.b16 %v138, %v136
    %v159 = vpack.c.b16 %v141, %v139
    %v160 = vpack.c.b16 %v142, %v140
    %v161 = vpack.c.b16 %v143, %v143
    %v162 = vpack.c.b16 %v144, %v144
    %vm179 = vcmask 31744
    %v181 = vsel %vm179, %v92, 0
    %vm183 = vcmask 1041408
    %v185 = vsel %vm183, %v161, 0
    %v188 = vsel %vm183, %v162, 0
    %190 = vmatprep.subr.bf16.mxu0 %v146
    %191 = vmatpush1.bf16.msra.mxu0 %v145
    %192 = vmatprep.subr.bf16.mxu0 %v148
    %193 = vmatpush1.bf16.msra.mxu0 %v147
    %194 = vmatprep.subr.bf16.mxu0 %v150
    %195 = vmatpush1.bf16.msra.mxu0 %v149
    %196 = vmatprep.subr.bf16.mxu0 %v152
    %197 = vmatpush1.bf16.msra.mxu0 %v151
    %198 = vmatprep.subr.bf16.mxu0 %v154
    %199 = vmatpush1.bf16.msra.mxu0 %v153
    %200 = vmatprep.subr.bf16.mxu0 %v156
    %201 = vmatpush1.bf16.msra.mxu0 %v155
    %202 = vmatprep.subr.bf16.mxu0 %v158
    %203 = vmatpush1.bf16.msra.mxu0 %v157
    %204 = vmatprep.subr.bf16.mxu0 %v160
    %205 = vmatpush1.bf16.msra.mxu0 %v159
    %206 = vmatprep.subr.bf16.mxu0 %v188
    %207 = vmatpush1.bf16.msra.mxu0 %v185
    %208 = vmatprep.subr.bf16.mxu0 0
    %209 = vmatpush1.bf16.msra.mxu0 0
    %210 = vmatprep.subr.bf16.mxu0 0
    %211 = vmatpush1.bf16.msra.mxu0 0
    %212 = vmatprep.subr.bf16.mxu0 0
    %213 = vmatpush1.bf16.msra.mxu0 0
    %214 = vmatprep.subr.bf16.mxu0 0
    %215 = vmatpush1.bf16.msra.mxu0 0
    %216 = vmatprep.subr.bf16.mxu0 0
    %217 = vmatpush1.bf16.msra.mxu0 0
    %218 = vmatprep.subr.bf16.mxu0 0
    %219 = vmatpush1.bf16.msra.mxu0 0
    %220 = vmatprep.subr.bf16.mxu0 0
    %221 = vmatpush1.bf16.msra.mxu0 0
    %222 = vmatprep.mubr.bf16.mxu0 %v181
    %223 = vmatmul.mubr.bf16.gmra.mrb[0].mxu0 %v89
    %v224 = vpop.f32.mrb[0].mxu0
    %v225 = vadd.f32 0.0, %v224
    %v226 = vpop.f32.mrb[0].mxu0
    %v227 = vadd.f32 0.0, %v226
    %v228 = vpop.f32.mrb[0].mxu0
    %v229 = vadd.f32 0.0, %v228
    %v230 = vpop.f32.mrb[0].mxu0
    %v231 = vadd.f32 0.0, %v230
    %232 = vdwg.mxu0
    %v234 = vunpack.c.l.b16 %v34
    %v235 = vunpack.c.h.b16 %v34
    %v236 = vpack.c.b16 %v78, %v234
    %v237 = vpack.c.b16 %v79, %v235
    %v256 = vunpack.c.l.b16 %v36
    %v257 = vunpack.c.h.b16 %v36
    %v258 = vunpack.c.l.b16 %v37
    %v259 = vunpack.c.h.b16 %v37
    %v260 = vunpack.c.l.b16 %v38
    %v261 = vunpack.c.h.b16 %v38
    %v262 = vunpack.c.l.b16 %v39
    %v263 = vunpack.c.h.b16 %v39
    %v264 = vunpack.c.l.b16 %v40
    %v265 = vunpack.c.h.b16 %v40
    %v266 = vunpack.c.l.b16 %v41
    %v267 = vunpack.c.h.b16 %v41
    %v268 = vunpack.c.l.b16 %v42
    %v269 = vunpack.c.h.b16 %v42
    %v270 = vunpack.c.l.b16 %v43
    %v271 = vunpack.c.h.b16 %v43
    %v272 = vunpack.c.l.b16 %v44
    %v273 = vunpack.c.h.b16 %v44
    %v274 = vunpack.c.l.b16 %v45
    %v275 = vunpack.c.h.b16 %v45
    %v276 = vunpack.c.l.b16 %v46
    %v277 = vunpack.c.h.b16 %v46
    %v278 = vunpack.c.l.b16 %v47
    %v279 = vunpack.c.h.b16 %v47
    %v280 = vunpack.c.l.b16 %v48
    %v281 = vunpack.c.h.b16 %v48
    %v282 = vunpack.c.l.b16 %v49
    %v283 = vunpack.c.h.b16 %v49
    %v284 = vunpack.c.l.b16 %v50
    %v285 = vunpack.c.h.b16 %v50
    %v286 = vunpack.c.l.b16 %v51
    %v287 = vunpack.c.h.b16 %v51
    %v288 = vunpack.c.l.b16 %v52
    %v289 = vunpack.c.h.b16 %v52
    %v290 = vpack.c.b16 %v258, %v256
    %v291 = vpack.c.b16 %v259, %v257
    %v292 = vpack.c.b16 %v262, %v260
    %v293 = vpack.c.b16 %v263, %v261
    %v294 = vpack.c.b16 %v266, %v264
    %v295 = vpack.c.b16 %v267, %v265
    %v296 = vpack.c.b16 %v270, %v268
    %v297 = vpack.c.b16 %v271, %v269
    %v298 = vpack.c.b16 %v274, %v272
    %v299 = vpack.c.b16 %v275, %v273
    %v300 = vpack.c.b16 %v278, %v276
    %v301 = vpack.c.b16 %v279, %v277
    %v302 = vpack.c.b16 %v282, %v280
    %v303 = vpack.c.b16 %v283, %v281
    %v304 = vpack.c.b16 %v286, %v284
    %v305 = vpack.c.b16 %v287, %v285
    %v306 = vpack.c.b16 %v288, %v288
    %v307 = vpack.c.b16 %v289, %v289
    %v325 = vsel %vm179, %v237, 0
    %v328 = vsel %vm183, %v306, 0
    %v331 = vsel %vm183, %v307, 0
    %333 = vmatprep.subr.bf16.mxu0 %v291
    %334 = vmatpush1.bf16.msra.mxu0 %v290
    %335 = vmatprep.subr.bf16.mxu0 %v293
    %336 = vmatpush1.bf16.msra.mxu0 %v292
    %337 = vmatprep.subr.bf16.mxu0 %v295
    %338 = vmatpush1.bf16.msra.mxu0 %v294
    %339 = vmatprep.subr.bf16.mxu0 %v297
    %340 = vmatpush1.bf16.msra.mxu0 %v296
    %341 = vmatprep.subr.bf16.mxu0 %v299
    %342 = vmatpush1.bf16.msra.mxu0 %v298
    %343 = vmatprep.subr.bf16.mxu0 %v301
    %344 = vmatpush1.bf16.msra.mxu0 %v300
    %345 = vmatprep.subr.bf16.mxu0 %v303
    %346 = vmatpush1.bf16.msra.mxu0 %v302
    %347 = vmatprep.subr.bf16.mxu0 %v305
    %348 = vmatpush1.bf16.msra.mxu0 %v304
    %349 = vmatprep.subr.bf16.mxu0 %v331
    %350 = vmatpush1.bf16.msra.mxu0 %v328
    %351 = vmatprep.subr.bf16.mxu0 0
    %352 = vmatpush1.bf16.msra.mxu0 0
    %353 = vmatprep.subr.bf16.mxu0 0
    %354 = vmatpush1.bf16.msra.mxu0 0
    %355 = vmatprep.subr.bf16.mxu0 0
    %356 = vmatpush1.bf16.msra.mxu0 0
    %357 = vmatprep.subr.bf16.mxu0 0
    %358 = vmatpush1.bf16.msra.mxu0 0
    %359 = vmatprep.subr.bf16.mxu0 0
    %360 = vmatpush1.bf16.msra.mxu0 0
    %361 = vmatprep.subr.bf16.mxu0 0
    %362 = vmatpush1.bf16.msra.mxu0 0
    %363 = vmatprep.subr.bf16.mxu0 0
    %364 = vmatpush1.bf16.msra.mxu0 0
    %365 = vmatprep.mubr.bf16.mxu0 %v325
    %366 = vmatmul.mubr.bf16.gmra.mrb[0].mxu0 %v236
    %v367 = vpop.f32.mrb[0].mxu0
    %v368 = vadd.f32 %v225, %v367
    %v369 = vpop.f32.mrb[0].mxu0
    %v370 = vadd.f32 %v227, %v369
    %v371 = vpop.f32.mrb[0].mxu0
    %v372 = vadd.f32 %v229, %v371
    %v373 = vpop.f32.mrb[0].mxu0
    %v374 = vadd.f32 %v231, %v373
    %375 = vdwg.mxu0
    %v376 = vld [vmem:[%s0] sm:$0xcc]
    %v377 = vld [vmem:[%s0 + $0x10] sm:$0x33]
    %s378 = scalar_lea.vmem %s1, 272
    %v379 = vld [vmem:[%s378] sm:$0xff]
    %v380 = vld [vmem:[%s378 + $0x8] sm:$0xff]
    %v381 = vld [vmem:[%s378 + $0x10] sm:$0xff]
    %v382 = vld [vmem:[%s378 + $0x18] sm:$0xff]
    %v383 = vld [vmem:[%s378 + $0x20] sm:$0xff]
    %v384 = vld [vmem:[%s378 + $0x28] sm:$0xff]
    %v385 = vld [vmem:[%s378 + $0x30] sm:$0xff]
    %v386 = vld [vmem:[%s378 + $0x38] sm:$0xff]
    %v387 = vld [vmem:[%s378 + $0x40] sm:$0xff]
    %v388 = vld [vmem:[%s378 + $0x48] sm:$0xff]
    %v389 = vld [vmem:[%s378 + $0x50] sm:$0xff]
    %v390 = vld [vmem:[%s378 + $0x58] sm:$0xff]
    %v391 = vld [vmem:[%s378 + $0x60] sm:$0xff]
    %v392 = vld [vmem:[%s378 + $0x68] sm:$0xff]
    %v393 = vld [vmem:[%s378 + $0x70] sm:$0xff]
    %v394 = vld [vmem:[%s378 + $0x78] sm:$0xff]
    %v395 = vld [vmem:[%s378 + $0x80] sm:$0x33]
    %v398 = vunpack.c.l.b16 %v376
    %v399 = vunpack.c.h.b16 %v376
    %v400 = vunpack.c.l.b16 %v377
    %v401 = vunpack.c.h.b16 %v377
    %v402 = vpack.c.b16 %v78, %v398
    %v403 = vpack.c.b16 %v79, %v399
    %v404 = vpack.c.b16 %v400, %v400
    %v405 = vpack.c.b16 %v401, %v401
    %vm406 = vcmask 1045504
    %v407 = vrot.slane %v402, 2
    %v408 = vrot.slane %v404, 2
    %v409 = vsel %vm406, %v407, %v408
    %v410 = vrot.slane %v403, 2
    %v411 = vrot.slane %v405, 2
    %v412 = vsel %vm406, %v410, %v411
    %v431 = vunpack.c.l.b16 %v379
    %v432 = vunpack.c.h.b16 %v379
    %v433 = vunpack.c.l.b16 %v380
    %v434 = vunpack.c.h.b16 %v380
    %v435 = vunpack.c.l.b16 %v381
    %v436 = vunpack.c.h.b16 %v381
    %v437 = vunpack.c.l.b16 %v382
    %v438 = vunpack.c.h.b16 %v382
    %v439 = vunpack.c.l.b16 %v383
    %v440 = vunpack.c.h.b16 %v383
    %v441 = vunpack.c.l.b16 %v384
    %v442 = vunpack.c.h.b16 %v384
    %v443 = vunpack.c.l.b16 %v385
    %v444 = vunpack.c.h.b16 %v385
    %v445 = vunpack.c.l.b16 %v386
    %v446 = vunpack.c.h.b16 %v386
    %v447 = vunpack.c.l.b16 %v387
    %v448 = vunpack.c.h.b16 %v387
    %v449 = vunpack.c.l.b16 %v388
    %v450 = vunpack.c.h.b16 %v388
    %v451 = vunpack.c.l.b16 %v389
    %v452 = vunpack.c.h.b16 %v389
    %v453 = vunpack.c.l.b16 %v390
    %v454 = vunpack.c.h.b16 %v390
    %v455 = vunpack.c.l.b16 %v391
    %v456 = vunpack.c.h.b16 %v391
    %v457 = vunpack.c.l.b16 %v392
    %v458 = vunpack.c.h.b16 %v392
    %v459 = vunpack.c.l.b16 %v393
    %v460 = vunpack.c.h.b16 %v393
    %v461 = vunpack.c.l.b16 %v394
    %v462 = vunpack.c.h.b16 %v394
    %v463 = vunpack.c.l.b16 %v395
    %v464 = vunpack.c.h.b16 %v395
    %v465 = vpack.c.b16 %v433, %v431
    %v466 = vpack.c.b16 %v434, %v432
    %v467 = vpack.c.b16 %v437, %v435
    %v468 = vpack.c.b16 %v438, %v436
    %v469 = vpack.c.b16 %v441, %v439
    %v470 = vpack.c.b16 %v442, %v440
    %v471 = vpack.c.b16 %v445, %v443
    %v472 = vpack.c.b16 %v446, %v444
    %v473 = vpack.c.b16 %v449, %v447
    %v474 = vpack.c.b16 %v450, %v448
    %v475 = vpack.c.b16 %v453, %v451
    %v476 = vpack.c.b16 %v454, %v452
    %v477 = vpack.c.b16 %v457, %v455
    %v478 = vpack.c.b16 %v458, %v456
    %v479 = vpack.c.b16 %v461, %v459
    %v480 = vpack.c.b16 %v462, %v460
    %v481 = vpack.c.b16 %v463, %v463
    %v482 = vpack.c.b16 %v464, %v464
    %v500 = vsel %vm179, %v412, 0
    %v503 = vsel %vm183, %v481, 0
    %v506 = vsel %vm183, %v482, 0
    %508 = vmatprep.subr.bf16.mxu0 %v466
    %509 = vmatpush1.bf16.msra.mxu0 %v465
    %510 = vmatprep.subr.bf16.mxu0 %v468
    %511 = vmatpush1.bf16.msra.mxu0 %v467
    %512 = vmatprep.subr.bf16.mxu0 %v470
    %513 = vmatpush1.bf16.msra.mxu0 %v469
    %514 = vmatprep.subr.bf16.mxu0 %v472
    %515 = vmatpush1.bf16.msra.mxu0 %v471
    %516 = vmatprep.subr.bf16.mxu0 %v474
    %517 = vmatpush1.bf16.msra.mxu0 %v473
    %518 = vmatprep.subr.bf16.mxu0 %v476
    %519 = vmatpush1.bf16.msra.mxu0 %v475
    %520 = vmatprep.subr.bf16.mxu0 %v478
    %521 = vmatpush1.bf16.msra.mxu0 %v477
    %522 = vmatprep.subr.bf16.mxu0 %v480
    %523 = vmatpush1.bf16.msra.mxu0 %v479
    %524 = vmatprep.subr.bf16.mxu0 %v506
    %525 = vmatpush1.bf16.msra.mxu0 %v503
    %526 = vmatprep.subr.bf16.mxu0 0
    %527 = vmatpush1.bf16.msra.mxu0 0
    %528 = vmatprep.subr.bf16.mxu0 0
    %529 = vmatpush1.bf16.msra.mxu0 0
    %530 = vmatprep.subr.bf16.mxu0 0
    %531 = vmatpush1.bf16.msra.mxu0 0
    %532 = vmatprep.subr.bf16.mxu0 0
    %533 = vmatpush1.bf16.msra.mxu0 0
    %534 = vmatprep.subr.bf16.mxu0 0
    %535 = vmatpush1.bf16.msra.mxu0 0
    %536 = vmatprep.subr.bf16.mxu0 0
    %537 = vmatpush1.bf16.msra.mxu0 0
    %538 = vmatprep.subr.bf16.mxu0 0
    %539 = vmatpush1.bf16.msra.mxu0 0
    %540 = vmatprep.mubr.bf16.mxu0 %v500
    %541 = vmatmul.mubr.bf16.gmra.mrb[0].mxu0 %v409
    %v542 = vpop.f32.mrb[0].mxu0
    %v543 = vadd.f32 0.0, %v542
    %v544 = vpop.f32.mrb[0].mxu0
    %v545 = vadd.f32 0.0, %v544
    %v546 = vpop.f32.mrb[0].mxu0
    %v547 = vadd.f32 0.0, %v546
    %v548 = vpop.f32.mrb[0].mxu0
    %v549 = vadd.f32 0.0, %v548
    %550 = vdwg.mxu0
    %v551 = vadd.f32 %v368, %v543
    %v552 = vadd.f32 %v370, %v545
    %v553 = vadd.f32 %v372, %v547
    %v554 = vadd.f32 %v374, %v549
    %v555 = vld [vmem:[%s0] sm:$0x88]
    %v556 = vld [vmem:[%s0 + $0x10] sm:$0x77]
    %s557 = scalar_lea.vmem %s1, 408
    %v558 = vld [vmem:[%s557] sm:$0xff]
    %v559 = vld [vmem:[%s557 + $0x8] sm:$0xff]
    %v560 = vld [vmem:[%s557 + $0x10] sm:$0xff]
    %v561 = vld [vmem:[%s557 + $0x18] sm:$0xff]
    %v562 = vld [vmem:[%s557 + $0x20] sm:$0xff]
    %v563 = vld [vmem:[%s557 + $0x28] sm:$0xff]
    %v564 = vld [vmem:[%s557 + $0x30] sm:$0xff]
    %v565 = vld [vmem:[%s557 + $0x38] sm:$0xff]
    %v566 = vld [vmem:[%s557 + $0x40] sm:$0xff]
    %v567 = vld [vmem:[%s557 + $0x48] sm:$0xff]
    %v568 = vld [vmem:[%s557 + $0x50] sm:$0xff]
    %v569 = vld [vmem:[%s557 + $0x58] sm:$0xff]
    %v570 = vld [vmem:[%s557 + $0x60] sm:$0xff]
    %v571 = vld [vmem:[%s557 + $0x68] sm:$0xff]
    %v572 = vld [vmem:[%s557 + $0x70] sm:$0xff]
    %v573 = vld [vmem:[%s557 + $0x78] sm:$0xff]
    %v574 = vld [vmem:[%s557 + $0x80] sm:$0x33]
    %v577 = vunpack.c.l.b16 %v555
    %v578 = vunpack.c.h.b16 %v555
    %v579 = vunpack.c.l.b16 %v556
    %v580 = vunpack.c.h.b16 %v556
    %v581 = vpack.c.b16 %v78, %v577
    %v582 = vpack.c.b16 %v79, %v578
    %v583 = vpack.c.b16 %v579, %v579
    %v584 = vpack.c.b16 %v580, %v580
    %vm585 = vcmask 1044480
    %v586 = vrot.slane %v581, 3
    %v587 = vrot.slane %v583, 3
    %v588 = vsel %vm585, %v586, %v587
    %v589 = vrot.slane %v582, 3
    %v590 = vrot.slane %v584, 3
    %v591 = vsel %vm585, %v589, %v590
    %v610 = vunpack.c.l.b16 %v558
    %v611 = vunpack.c.h.b16 %v558
    %v612 = vunpack.c.l.b16 %v559
    %v613 = vunpack.c.h.b16 %v559
    %v614 = vunpack.c.l.b16 %v560
    %v615 = vunpack.c.h.b16 %v560
    %v616 = vunpack.c.l.b16 %v561
    %v617 = vunpack.c.h.b16 %v561
    %v618 = vunpack.c.l.b16 %v562
    %v619 = vunpack.c.h.b16 %v562
    %v620 = vunpack.c.l.b16 %v563
    %v621 = vunpack.c.h.b16 %v563
    %v622 = vunpack.c.l.b16 %v564
    %v623 = vunpack.c.h.b16 %v564
    %v624 = vunpack.c.l.b16 %v565
    %v625 = vunpack.c.h.b16 %v565
    %v626 = vunpack.c.l.b16 %v566
    %v627 = vunpack.c.h.b16 %v566
    %v628 = vunpack.c.l.b16 %v567
    %v629 = vunpack.c.h.b16 %v567
    %v630 = vunpack.c.l.b16 %v568
    %v631 = vunpack.c.h.b16 %v568
    %v632 = vunpack.c.l.b16 %v569
    %v633 = vunpack.c.h.b16 %v569
    %v634 = vunpack.c.l.b16 %v570
    %v635 = vunpack.c.h.b16 %v570
    %v636 = vunpack.c.l.b16 %v571
    %v637 = vunpack.c.h.b16 %v571
    %v638 = vunpack.c.l.b16 %v572
    %v639 = vunpack.c.h.b16 %v572
    %v640 = vunpack.c.l.b16 %v573
    %v641 = vunpack.c.h.b16 %v573
    %v642 = vunpack.c.l.b16 %v574
    %v643 = vunpack.c.h.b16 %v574
    %v644 = vpack.c.b16 %v612, %v610
    %v645 = vpack.c.b16 %v613, %v611
    %v646 = vpack.c.b16 %v616, %v614
    %v647 = vpack.c.b16 %v617, %v615
    %v648 = vpack.c.b16 %v620, %v618
    %v649 = vpack.c.b16 %v621, %v619
    %v650 = vpack.c.b16 %v624, %v622
    %v651 = vpack.c.b16 %v625, %v623
    %v652 = vpack.c.b16 %v628, %v626
    %v653 = vpack.c.b16 %v629, %v627
    %v654 = vpack.c.b16 %v632, %v630
    %v655 = vpack.c.b16 %v633, %v631
    %v656 = vpack.c.b16 %v636, %v634
    %v657 = vpack.c.b16 %v637, %v635
    %v658 = vpack.c.b16 %v640, %v638
    %v659 = vpack.c.b16 %v641, %v639
    %v660 = vpack.c.b16 %v642, %v642
    %v661 = vpack.c.b16 %v643, %v643
    %v679 = vsel %vm179, %v591, 0
    %v682 = vsel %vm183, %v660, 0
    %v685 = vsel %vm183, %v661, 0
    %687 = vmatprep.subr.bf16.mxu0 %v645
    %688 = vmatpush1.bf16.msra.mxu0 %v644
    %689 = vmatprep.subr.bf16.mxu0 %v647
    %690 = vmatpush1.bf16.msra.mxu0 %v646
    %691 = vmatprep.subr.bf16.mxu0 %v649
    %692 = vmatpush1.bf16.msra.mxu0 %v648
    %693 = vmatprep.subr.bf16.mxu0 %v651
    %694 = vmatpush1.bf16.msra.mxu0 %v650
    %695 = vmatprep.subr.bf16.mxu0 %v653
    %696 = vmatpush1.bf16.msra.mxu0 %v652
    %697 = vmatprep.subr.bf16.mxu0 %v655
    %698 = vmatpush1.bf16.msra.mxu0 %v654
    %699 = vmatprep.subr.bf16.mxu0 %v657
    %700 = vmatpush1.bf16.msra.mxu0 %v656
    %701 = vmatprep.subr.bf16.mxu0 %v659
    %702 = vmatpush1.bf16.msra.mxu0 %v658
    %703 = vmatprep.subr.bf16.mxu0 %v685
    %704 = vmatpush1.bf16.msra.mxu0 %v682
    %705 = vmatprep.subr.bf16.mxu0 0
    %706 = vmatpush1.bf16.msra.mxu0 0
    %707 = vmatprep.subr.bf16.mxu0 0
    %708 = vmatpush1.bf16.msra.mxu0 0
    %709 = vmatprep.subr.bf16.mxu0 0
    %710 = vmatpush1.bf16.msra.mxu0 0
    %711 = vmatprep.subr.bf16.mxu0 0
    %712 = vmatpush1.bf16.msra.mxu0 0
    %713 = vmatprep.subr.bf16.mxu0 0
    %714 = vmatpush1.bf16.msra.mxu0 0
    %715 = vmatprep.subr.bf16.mxu0 0
    %716 = vmatpush1.bf16.msra.mxu0 0
    %717 = vmatprep.subr.bf16.mxu0 0
    %718 = vmatpush1.bf16.msra.mxu0 0
    %719 = vmatprep.mubr.bf16.mxu0 %v679
    %720 = vmatmul.mubr.bf16.gmra.mrb[0].mxu0 %v588
    %v721 = vpop.f32.mrb[0].mxu0
    %v722 = vadd.f32 0.0, %v721
    %v723 = vpop.f32.mrb[0].mxu0
    %v724 = vadd.f32 0.0, %v723
    %v725 = vpop.f32.mrb[0].mxu0
    %v726 = vadd.f32 0.0, %v725
    %v727 = vpop.f32.mrb[0].mxu0
    %v728 = vadd.f32 0.0, %v727
    %729 = vdwg.mxu0
    %v730 = vadd.f32 %v551, %v722
    %v731 = vadd.f32 %v552, %v724
    %v732 = vadd.f32 %v553, %v726
    %v733 = vadd.f32 %v554, %v728
    %v734 = vld [vmem:[%s2] sm:$0x3]
    %v736 = vlaneseq
    %v737 = vshrl.u32 %v736, 7
    %v738 = vsub.s32 0, %v737
    %v739 = vrot.slane %v734, %v738
    %v740 = vlaneseq
    %v741 = vshrl.u32 %v740, 7
    %v742 = vsub.s32 1, %v741
    %v743 = vrot.slane %v734, %v742
    %v746 = vadd.f32 %v730, %v739
    %v747 = vadd.f32 %v731, %v743
    %v748 = vadd.f32 %v732, %v739
    %v749 = vadd.f32 %v733, %v743
    %v750 = vmax.f32 %v746, 0.0
    %v751 = vmax.f32 %v747, 0.0
    %v752 = vmax.f32 %v748, 0.0
    %v753 = vmax.f32 %v749, 0.0
    %v754 = vpack.c.bf16 %v752, %v750
    %v755 = vpack.c.bf16 %v753, %v751
    %v757 = vunpack.c.l.b16 %v754
    %v758 = vunpack.c.h.b16 %v754
    %v759 = vpack.c.b16 %v757, %v757
    %v760 = vpack.c.b16 %v758, %v758
    %763 = vst [vmem:[#allocation2 + $0x4] sm:$0xf] %v759
    %764 = vst [vmem:[#allocation2 + $0xc] sm:$0xf] %v760
    %v766 = vunpack.c.l.b16 %v755
    %v767 = vunpack.c.h.b16 %v755
    %v768 = vpack.c.b16 %v766, %v766
    %v769 = vpack.c.b16 %v767, %v767
    %vm770 = vcmask 1040384
    %vm771 = vcmask 1044484
    %vm772 = vmor %vm770, %vm771
    %v773 = vrot.slane %v768, 7
    %v774 = vrot.slane %v773, 4
    %v775 = vrot.slane %v769, 7
    %v776 = vsel %vm772, %v774, %v775
    %v777 = vrot.slane %v775, 4
    %781 = vst [vmem:[#allocation2] sm:$0xe] %v773
    %782 = vst [vmem:[#allocation2 + $0x8] sm:$0xf] %v776
    %783 = vst [vmem:[#allocation2 + $0x10] sm:$0x1] %v777
    %784 = vst [vmem:[#allocation2] sm:$0x1] 0
    %785 = vst [vmem:[#allocation2 + $0x14] sm:$0x1] 0
    %v786 = vld [vmem:[#allocation2] sm:$0xff]
    %v787 = vld [vmem:[#allocation2 + $0x8] sm:$0xff]
    %v788 = vld [vmem:[%s3] sm:$0xf]
    %v789 = vld [vmem:[%s3 + $0x4] sm:$0xf]
    %v790 = vld [vmem:[%s3 + $0x8] sm:$0xf]
    %v791 = vld [vmem:[%s3 + $0xc] sm:$0xf]
    %v792 = vld [vmem:[%s3 + $0x10] sm:$0xf]
    %v793 = vld [vmem:[%s3 + $0x14] sm:$0xf]
    %v794 = vld [vmem:[%s3 + $0x18] sm:$0xf]
    %v795 = vld [vmem:[%s3 + $0x1c] sm:$0xf]
    %v796 = vld [vmem:[%s3 + $0x20] sm:$0xf]
    %v797 = vld [vmem:[%s3 + $0x24] sm:$0xf]
    %v798 = vld [vmem:[%s3 + $0x28] sm:$0xf]
    %v799 = vld [vmem:[%s3 + $0x2c] sm:$0xf]
    %v800 = vld [vmem:[%s3 + $0x30] sm:$0xf]
    %v801 = vld [vmem:[%s3 + $0x34] sm:$0xf]
    %v802 = vld [vmem:[%s3 + $0x38] sm:$0xf]
    %v803 = vld [vmem:[%s3 + $0x3c] sm:$0xf]
    %v804 = vld [vmem:[%s3 + $0x40] sm:$0xf]
    %v805 = vld [vmem:[%s3 + $0x44] sm:$0xf]
    %v806 = vld [vmem:[%s3 + $0x48] sm:$0xf]
    %v807 = vld [vmem:[%s3 + $0x4c] sm:$0xf]
    %v808 = vld [vmem:[%s3 + $0x50] sm:$0xf]
    %v809 = vld [vmem:[%s3 + $0x54] sm:$0xf]
    %v810 = vld [vmem:[%s3 + $0x58] sm:$0xf]
    %v811 = vld [vmem:[%s3 + $0x5c] sm:$0xf]
    %v812 = vld [vmem:[%s3 + $0x60] sm:$0xf]
    %v813 = vld [vmem:[%s3 + $0x64] sm:$0xf]
    %v814 = vld [vmem:[%s3 + $0x68] sm:$0xf]
    %v815 = vld [vmem:[%s3 + $0x6c] sm:$0xf]
    %v816 = vld [vmem:[%s3 + $0x70] sm:$0xf]
    %v817 = vld [vmem:[%s3 + $0x74] sm:$0xf]
    %v818 = vld [vmem:[%s3 + $0x78] sm:$0xf]
    %v819 = vld [vmem:[%s3 + $0x7c] sm:$0xf]
    %v820 = vld [vmem:[#allocation2] sm:$0xee]
    %v821 = vld [vmem:[#allocation2 + $0x10] sm:$0x11]
    %s822 = scalar_lea.vmem %s3, 128
    %v823 = vld [vmem:[%s822] sm:$0xf]
    %v824 = vld [vmem:[%s822 + $0x4] sm:$0xf]
    %v825 = vld [vmem:[%s822 + $0x8] sm:$0xf]
    %v826 = vld [vmem:[%s822 + $0xc] sm:$0xf]
    %v827 = vld [vmem:[%s822 + $0x10] sm:$0xf]
    %v828 = vld [vmem:[%s822 + $0x14] sm:$0xf]
    %v829 = vld [vmem:[%s822 + $0x18] sm:$0xf]
    %v830 = vld [vmem:[%s822 + $0x1c] sm:$0xf]
    %v831 = vld [vmem:[%s822 + $0x20] sm:$0xf]
    %v832 = vld [vmem:[%s822 + $0x24] sm:$0xf]
    %v833 = vld [vmem:[%s822 + $0x28] sm:$0xf]
    %v834 = vld [vmem:[%s822 + $0x2c] sm:$0xf]
    %v835 = vld [vmem:[%s822 + $0x30] sm:$0xf]
    %v836 = vld [vmem:[%s822 + $0x34] sm:$0xf]
    %v837 = vld [vmem:[%s822 + $0x38] sm:$0xf]
    %v838 = vld [vmem:[%s822 + $0x3c] sm:$0xf]
    %v839 = vld [vmem:[%s822 + $0x40] sm:$0xf]
    %v840 = vld [vmem:[%s822 + $0x44] sm:$0xf]
    %v841 = vld [vmem:[%s822 + $0x48] sm:$0xf]
    %v842 = vld [vmem:[%s822 + $0x4c] sm:$0xf]
    %v843 = vld [vmem:[%s822 + $0x50] sm:$0xf]
    %v844 = vld [vmem:[%s822 + $0x54] sm:$0xf]
    %v845 = vld [vmem:[%s822 + $0x58] sm:$0xf]
    %v846 = vld [vmem:[%s822 + $0x5c] sm:$0xf]
    %v847 = vld [vmem:[%s822 + $0x60] sm:$0xf]
    %v848 = vld [vmem:[%s822 + $0x64] sm:$0xf]
    %v849 = vld [vmem:[%s822 + $0x68] sm:$0xf]
    %v850 = vld [vmem:[%s822 + $0x6c] sm:$0xf]
    %v851 = vld [vmem:[%s822 + $0x70] sm:$0xf]
    %v852 = vld [vmem:[%s822 + $0x74] sm:$0xf]
    %v853 = vld [vmem:[%s822 + $0x78] sm:$0xf]
    %v854 = vld [vmem:[%s822 + $0x7c] sm:$0xf]
    %v858 = vunpack.c.l.b16 %v820
    %v859 = vunpack.c.h.b16 %v820
    %v860 = vunpack.c.l.b16 %v787
    %v861 = vunpack.c.h.b16 %v787
    %v862 = vunpack.c.l.b16 %v821
    %v863 = vunpack.c.h.b16 %v821
    %v864 = vpack.c.b16 %v860, %v858
    %v865 = vpack.c.b16 %v861, %v859
    %v866 = vpack.c.b16 %v862, %v862
    %v867 = vpack.c.b16 %v863, %v863
    %v868 = vrot.slane %v864, 1
    %v869 = vrot.slane %v866, 1
    %v870 = vsel %vm86, %v868, %v869
    %v871 = vrot.slane %v865, 1
    %v872 = vrot.slane %v867, 1
    %v873 = vsel %vm86, %v871, %v872
    %v908 = vunpack.c.l.b16 %v823
    %v909 = vunpack.c.l.b16 %v824
    %v910 = vunpack.c.l.b16 %v825
    %v911 = vunpack.c.l.b16 %v826
    %v912 = vunpack.c.l.b16 %v827
    %v913 = vunpack.c.l.b16 %v828
    %v914 = vunpack.c.l.b16 %v829
    %v915 = vunpack.c.l.b16 %v830
    %v916 = vunpack.c.l.b16 %v831
    %v917 = vunpack.c.l.b16 %v832
    %v918 = vunpack.c.l.b16 %v833
    %v919 = vunpack.c.l.b16 %v834
    %v920 = vunpack.c.l.b16 %v835
    %v921 = vunpack.c.l.b16 %v836
    %v922 = vunpack.c.l.b16 %v837
    %v923 = vunpack.c.l.b16 %v838
    %v924 = vunpack.c.l.b16 %v839
    %v925 = vunpack.c.l.b16 %v840
    %v926 = vunpack.c.l.b16 %v841
    %v927 = vunpack.c.l.b16 %v842
    %v928 = vunpack.c.l.b16 %v843
    %v929 = vunpack.c.l.b16 %v844
    %v930 = vunpack.c.l.b16 %v845
    %v931 = vunpack.c.l.b16 %v846
    %v932 = vunpack.c.l.b16 %v847
    %v933 = vunpack.c.l.b16 %v848
    %v934 = vunpack.c.l.b16 %v849
    %v935 = vunpack.c.l.b16 %v850
    %v936 = vunpack.c.l.b16 %v851
    %v937 = vunpack.c.l.b16 %v852
    %v938 = vunpack.c.l.b16 %v853
    %v939 = vunpack.c.l.b16 %v854
    %v940 = vpack.c.b16 %v909, %v908
    %v941 = vpack.c.b16 %v911, %v910
    %v942 = vpack.c.b16 %v913, %v912
    %v943 = vpack.c.b16 %v915, %v914
    %v944 = vpack.c.b16 %v917, %v916
    %v945 = vpack.c.b16 %v919, %v918
    %v946 = vpack.c.b16 %v921, %v920
    %v947 = vpack.c.b16 %v923, %v922
    %v948 = vpack.c.b16 %v925, %v924
    %v949 = vpack.c.b16 %v927, %v926
    %v950 = vpack.c.b16 %v929, %v928
    %v951 = vpack.c.b16 %v931, %v930
    %v952 = vpack.c.b16 %v933, %v932
    %v953 = vpack.c.b16 %v935, %v934
    %v954 = vpack.c.b16 %v937, %v936
    %v955 = vpack.c.b16 %v939, %v938
    %972 = vmatprep.subr.bf16.mxu0 0
    %973 = vmatpush1.bf16.msra.mxu0 %v940
    %974 = vmatprep.subr.bf16.mxu0 0
    %975 = vmatpush1.bf16.msra.mxu0 %v941
    %976 = vmatprep.subr.bf16.mxu0 0
    %977 = vmatpush1.bf16.msra.mxu0 %v942
    %978 = vmatprep.subr.bf16.mxu0 0
    %979 = vmatpush1.bf16.msra.mxu0 %v943
    %980 = vmatprep.subr.bf16.mxu0 0
    %981 = vmatpush1.bf16.msra.mxu0 %v944
    %982 = vmatprep.subr.bf16.mxu0 0
    %983 = vmatpush1.bf16.msra.mxu0 %v945
    %984 = vmatprep.subr.bf16.mxu0 0
    %985 = vmatpush1.bf16.msra.mxu0 %v946
    %986 = vmatprep.subr.bf16.mxu0 0
    %987 = vmatpush1.bf16.msra.mxu0 %v947
    %988 = vmatprep.subr.bf16.mxu0 0
    %989 = vmatpush1.bf16.msra.mxu0 %v948
    %990 = vmatprep.subr.bf16.mxu0 0
    %991 = vmatpush1.bf16.msra.mxu0 %v949
    %992 = vmatprep.subr.bf16.mxu0 0
    %993 = vmatpush1.bf16.msra.mxu0 %v950
    %994 = vmatprep.subr.bf16.mxu0 0
    %995 = vmatpush1.bf16.msra.mxu0 %v951
    %996 = vmatprep.subr.bf16.mxu0 0
    %997 = vmatpush1.bf16.msra.mxu0 %v952
    %998 = vmatprep.subr.bf16.mxu0 0
    %999 = vmatpush1.bf16.msra.mxu0 %v953
    %1000 = vmatprep.subr.bf16.mxu0 0
    %1001 = vmatpush1.bf16.msra.mxu0 %v954
    %1002 = vmatprep.subr.bf16.mxu0 0
    %1003 = vmatpush1.bf16.msra.mxu0 %v955
    %1004 = vmatprep.mubr.bf16.mxu0 %v873
    %1005 = vmatmul.mubr.bf16.gmra.mrb[0].mxu0 %v870
    %v1006 = vpop.f32.mrb[0].mxu0
    %v1007 = vadd.f32 0.0, %v1006
    %v1008 = vpop.f32.mrb[0].mxu0
    %v1009 = vpop.f32.mrb[0].mxu0
    %v1010 = vadd.f32 0.0, %v1009
    %v1011 = vpop.f32.mrb[0].mxu0
    %1012 = vdwg.mxu0
    %v1014 = vunpack.c.l.b16 %v786
    %v1015 = vunpack.c.h.b16 %v786
    %v1016 = vpack.c.b16 %v860, %v1014
    %v1017 = vpack.c.b16 %v861, %v1015
    %v1052 = vunpack.c.l.b16 %v788
    %v1053 = vunpack.c.l.b16 %v789
    %v1054 = vunpack.c.l.b16 %v790
    %v1055 = vunpack.c.l.b16 %v791
    %v1056 = vunpack.c.l.b16 %v792
    %v1057 = vunpack.c.l.b16 %v793
    %v1058 = vunpack.c.l.b16 %v794
    %v1059 = vunpack.c.l.b16 %v795
    %v1060 = vunpack.c.l.b16 %v796
    %v1061 = vunpack.c.l.b16 %v797
    %v1062 = vunpack.c.l.b16 %v798
    %v1063 = vunpack.c.l.b16 %v799
    %v1064 = vunpack.c.l.b16 %v800
    %v1065 = vunpack.c.l.b16 %v801
    %v1066 = vunpack.c.l.b16 %v802
    %v1067 = vunpack.c.l.b16 %v803
    %v1068 = vunpack.c.l.b16 %v804
    %v1069 = vunpack.c.l.b16 %v805
    %v1070 = vunpack.c.l.b16 %v806
    %v1071 = vunpack.c.l.b16 %v807
    %v1072 = vunpack.c.l.b16 %v808
    %v1073 = vunpack.c.l.b16 %v809
    %v1074 = vunpack.c.l.b16 %v810
    %v1075 = vunpack.c.l.b16 %v811
    %v1076 = vunpack.c.l.b16 %v812
    %v1077 = vunpack.c.l.b16 %v813
    %v1078 = vunpack.c.l.b16 %v814
    %v1079 = vunpack.c.l.b16 %v815
    %v1080 = vunpack.c.l.b16 %v816
    %v1081 = vunpack.c.l.b16 %v817
    %v1082 = vunpack.c.l.b16 %v818
    %v1083 = vunpack.c.l.b16 %v819
    %v1084 = vpack.c.b16 %v1053, %v1052
    %v1085 = vpack.c.b16 %v1055, %v1054
    %v1086 = vpack.c.b16 %v1057, %v1056
    %v1087 = vpack.c.b16 %v1059, %v1058
    %v1088 = vpack.c.b16 %v1061, %v1060
    %v1089 = vpack.c.b16 %v1063, %v1062
    %v1090 = vpack.c.b16 %v1065, %v1064
    %v1091 = vpack.c.b16 %v1067, %v1066
    %v1092 = vpack.c.b16 %v1069, %v1068
    %v1093 = vpack.c.b16 %v1071, %v1070
    %v1094 = vpack.c.b16 %v1073, %v1072
    %v1095 = vpack.c.b16 %v1075, %v1074
    %v1096 = vpack.c.b16 %v1077, %v1076
    %v1097 = vpack.c.b16 %v1079, %v1078
    %v1098 = vpack.c.b16 %v1081, %v1080
    %v1099 = vpack.c.b16 %v1083, %v1082
    %1116 = vmatprep.subr.bf16.mxu0 0
    %1117 = vmatpush1.bf16.msra.mxu0 %v1084
    %1118 = vmatprep.subr.bf16.mxu0 0
    %1119 = vmatpush1.bf16.msra.mxu0 %v1085
    %1120 = vmatprep.subr.bf16.mxu0 0
    %1121 = vmatpush1.bf16.msra.mxu0 %v1086
    %1122 = vmatprep.subr.bf16.mxu0 0
    %1123 = vmatpush1.bf16.msra.mxu0 %v1087
    %1124 = vmatprep.subr.bf16.mxu0 0
    %1125 = vmatpush1.bf16.msra.mxu0 %v1088
    %1126 = vmatprep.subr.bf16.mxu0 0
    %1127 = vmatpush1.bf16.msra.mxu0 %v1089
    %1128 = vmatprep.subr.bf16.mxu0 0
    %1129 = vmatpush1.bf16.msra.mxu0 %v1090
    %1130 = vmatprep.subr.bf16.mxu0 0
    %1131 = vmatpush1.bf16.msra.mxu0 %v1091
    %1132 = vmatprep.subr.bf16.mxu0 0
    %1133 = vmatpush1.bf16.msra.mxu0 %v1092
    %1134 = vmatprep.subr.bf16.mxu0 0
    %1135 = vmatpush1.bf16.msra.mxu0 %v1093
    %1136 = vmatprep.subr.bf16.mxu0 0
    %1137 = vmatpush1.bf16.msra.mxu0 %v1094
    %1138 = vmatprep.subr.bf16.mxu0 0
    %1139 = vmatpush1.bf16.msra.mxu0 %v1095
    %1140 = vmatprep.subr.bf16.mxu0 0
    %1141 = vmatpush1.bf16.msra.mxu0 %v1096
    %1142 = vmatprep.subr.bf16.mxu0 0
    %1143 = vmatpush1.bf16.msra.mxu0 %v1097
    %1144 = vmatprep.subr.bf16.mxu0 0
    %1145 = vmatpush1.bf16.msra.mxu0 %v1098
    %1146 = vmatprep.subr.bf16.mxu0 0
    %1147 = vmatpush1.bf16.msra.mxu0 %v1099
    %1148 = vmatprep.mubr.bf16.mxu0 %v1017
    %1149 = vmatmul.mubr.bf16.gmra.mrb[0].mxu0 %v1016
    %v1150 = vpop.f32.mrb[0].mxu0
    %v1151 = vadd.f32 %v1007, %v1150
    %v1152 = vpop.f32.mrb[0].mxu0
    %v1153 = vpop.f32.mrb[0].mxu0
    %v1154 = vadd.f32 %v1010, %v1153
    %v1155 = vpop.f32.mrb[0].mxu0
    %1156 = vdwg.mxu0
    %v1157 = vld [vmem:[%s4] sm:$0x1]
    %v1159 = vlaneseq
    %v1160 = vshrl.u32 %v1159, 7
    %v1161 = vsub.s32 0, %v1160
    %v1162 = vrot.slane %v1157, %v1161
    %v1164 = vadd.f32 %v1151, %v1162
    %v1165 = vadd.f32 %v1154, %v1162
    %v1166 = vmax.f32 %v1164, 0.0
    %v1167 = vmax.f32 %v1165, 0.0
    %1168 = vst [vmem:[#allocation3 + $0x2] sm:$0xff] %v1166
    %1169 = vst [vmem:[#allocation3 + $0xa] sm:$0xff] %v1167
    %1170 = vst [vmem:[#allocation3] sm:$0x3] 0.0
    %1171 = vst [vmem:[#allocation3 + $0x12] sm:$0x3] 0.0
    %v1172 = vld [vmem:[#allocation3] ss:$4 sm:$0xf]
    %v1173 = vpack.c.bf16 %v1172, %v1172
    %v1174 = vld [vmem:[%s5] sm:$0xf]
    %v1175 = vld [vmem:[%s5 + $0x4] sm:$0xf]
    %v1176 = vld [vmem:[%s5 + $0x8] sm:$0xf]
    %v1177 = vld [vmem:[%s5 + $0xc] sm:$0xf]
    %v1178 = vld [vmem:[%s5 + $0x10] sm:$0xf]
    %v1179 = vld [vmem:[%s5 + $0x14] sm:$0xf]
    %v1180 = vld [vmem:[%s5 + $0x18] sm:$0xf]
    %v1181 = vld [vmem:[%s5 + $0x1c] sm:$0xf]
    %v1182 = vld [vmem:[%s5 + $0x20] sm:$0xf]
    %v1183 = vld [vmem:[%s5 + $0x24] sm:$0xf]
    %v1184 = vld [vmem:[%s5 + $0x28] sm:$0xf]
    %v1185 = vld [vmem:[%s5 + $0x2c] sm:$0xf]
    %v1186 = vld [vmem:[%s5 + $0x30] sm:$0xf]
    %v1187 = vld [vmem:[%s5 + $0x34] sm:$0xf]
    %v1188 = vld [vmem:[%s5 + $0x38] sm:$0xf]
    %v1189 = vld [vmem:[%s5 + $0x3c] sm:$0xf]
    %s1190 = scalar_lea.vmem [#allocation3], 2
    %v1191 = vld [vmem:[%s1190] ss:$4 sm:$0xf]
    %v1192 = vpack.c.bf16 %v1191, %v1191
    %s1193 = scalar_lea.vmem %s5, 64
    %v1194 = vld [vmem:[%s1193] sm:$0xf]
    %v1195 = vld [vmem:[%s1193 + $0x4] sm:$0xf]
    %v1196 = vld [vmem:[%s1193 + $0x8] sm:$0xf]
    %v1197 = vld [vmem:[%s1193 + $0xc] sm:$0xf]
    %v1198 = vld [vmem:[%s1193 + $0x10] sm:$0xf]
    %v1199 = vld [vmem:[%s1193 + $0x14] sm:$0xf]
    %v1200 = vld [vmem:[%s1193 + $0x18] sm:$0xf]
    %v1201 = vld [vmem:[%s1193 + $0x1c] sm:$0xf]
    %v1202 = vld [vmem:[%s1193 + $0x20] sm:$0xf]
    %v1203 = vld [vmem:[%s1193 + $0x24] sm:$0xf]
    %v1204 = vld [vmem:[%s1193 + $0x28] sm:$0xf]
    %v1205 = vld [vmem:[%s1193 + $0x2c] sm:$0xf]
    %v1206 = vld [vmem:[%s1193 + $0x30] sm:$0xf]
    %v1207 = vld [vmem:[%s1193 + $0x34] sm:$0xf]
    %v1208 = vld [vmem:[%s1193 + $0x38] sm:$0xf]
    %v1209 = vld [vmem:[%s1193 + $0x3c] sm:$0xf]
    %v1226 = vunpack.c.l.b16 %v1194
    %v1227 = vunpack.c.l.b16 %v1195
    %v1228 = vunpack.c.l.b16 %v1196
    %v1229 = vunpack.c.l.b16 %v1197
    %v1230 = vunpack.c.l.b16 %v1198
    %v1231 = vunpack.c.l.b16 %v1199
    %v1232 = vunpack.c.l.b16 %v1200
    %v1233 = vunpack.c.l.b16 %v1201
    %v1234 = vunpack.c.l.b16 %v1202
    %v1235 = vunpack.c.l.b16 %v1203
    %v1236 = vunpack.c.l.b16 %v1204
    %v1237 = vunpack.c.l.b16 %v1205
    %v1238 = vunpack.c.l.b16 %v1206
    %v1239 = vunpack.c.l.b16 %v1207
    %v1240 = vunpack.c.l.b16 %v1208
    %v1241 = vunpack.c.l.b16 %v1209
    %v1242 = vpack.c.b16 %v1227, %v1226
    %v1243 = vpack.c.b16 %v1229, %v1228
    %v1244 = vpack.c.b16 %v1231, %v1230
    %v1245 = vpack.c.b16 %v1233, %v1232
    %v1246 = vpack.c.b16 %v1235, %v1234
    %v1247 = vpack.c.b16 %v1237, %v1236
    %v1248 = vpack.c.b16 %v1239, %v1238
    %v1249 = vpack.c.b16 %v1241, %v1240
    %1258 = vmatprep.subr.bf16.mxu0 0
    %1259 = vmatpush1.bf16.msra.mxu0 %v1242
    %1260 = vmatprep.subr.bf16.mxu0 0
    %1261 = vmatpush1.bf16.msra.mxu0 %v1243
    %1262 = vmatprep.subr.bf16.mxu0 0
    %1263 = vmatpush1.bf16.msra.mxu0 %v1244
    %1264 = vmatprep.subr.bf16.mxu0 0
    %1265 = vmatpush1.bf16.msra.mxu0 %v1245
    %1266 = vmatprep.subr.bf16.mxu0 0
    %1267 = vmatpush1.bf16.msra.mxu0 %v1246
    %1268 = vmatprep.subr.bf16.mxu0 0
    %1269 = vmatpush1.bf16.msra.mxu0 %v1247
    %1270 = vmatprep.subr.bf16.mxu0 0
    %1271 = vmatpush1.bf16.msra.mxu0 %v1248
    %1272 = vmatprep.subr.bf16.mxu0 0
    %1273 = vmatpush1.bf16.msra.mxu0 %v1249
    %1274 = vmatprep.subr.bf16.mxu0 0
    %1275 = vmatpush1.bf16.msra.mxu0 0
    %1276 = vmatprep.subr.bf16.mxu0 0
    %1277 = vmatpush1.bf16.msra.mxu0 0
    %1278 = vmatprep.subr.bf16.mxu0 0
    %1279 = vmatpush1.bf16.msra.mxu0 0
    %1280 = vmatprep.subr.bf16.mxu0 0
    %1281 = vmatpush1.bf16.msra.mxu0 0
    %1282 = vmatprep.subr.bf16.mxu0 0
    %1283 = vmatpush1.bf16.msra.mxu0 0
    %1284 = vmatprep.subr.bf16.mxu0 0
    %1285 = vmatpush1.bf16.msra.mxu0 0
    %1286 = vmatprep.subr.bf16.mxu0 0
    %1287 = vmatpush1.bf16.msra.mxu0 0
    %1288 = vmatprep.subr.bf16.mxu0 0
    %1289 = vmatpush1.bf16.msra.mxu0 0
    %1290 = vmatprep.mubr.bf16.mxu0 0
    %1291 = vmatmul.mubr.bf16.gmra.mrb[0].mxu0 %v1192
    %v1292 = vpop.f32.mrb[0].mxu0
    %v1293 = vadd.f32 0.0, %v1292
    %v1294 = vpop.f32.mrb[0].mxu0
    %v1295 = vpop.f32.mrb[0].mxu0
    %v1296 = vpop.f32.mrb[0].mxu0
    %1297 = vdwg.mxu0
    %v1314 = vunpack.c.l.b16 %v1174
    %v1315 = vunpack.c.l.b16 %v1175
    %v1316 = vunpack.c.l.b16 %v1176
    %v1317 = vunpack.c.l.b16 %v1177
    %v1318 = vunpack.c.l.b16 %v1178
    %v1319 = vunpack.c.l.b16 %v1179
    %v1320 = vunpack.c.l.b16 %v1180
    %v1321 = vunpack.c.l.b16 %v1181
    %v1322 = vunpack.c.l.b16 %v1182
    %v1323 = vunpack.c.l.b16 %v1183
    %v1324 = vunpack.c.l.b16 %v1184
    %v1325 = vunpack.c.l.b16 %v1185
    %v1326 = vunpack.c.l.b16 %v1186
    %v1327 = vunpack.c.l.b16 %v1187
    %v1328 = vunpack.c.l.b16 %v1188
    %v1329 = vunpack.c.l.b16 %v1189
    %v1330 = vpack.c.b16 %v1315, %v1314
    %v1331 = vpack.c.b16 %v1317, %v1316
    %v1332 = vpack.c.b16 %v1319, %v1318
    %v1333 = vpack.c.b16 %v1321, %v1320
    %v1334 = vpack.c.b16 %v1323, %v1322
    %v1335 = vpack.c.b16 %v1325, %v1324
    %v1336 = vpack.c.b16 %v1327, %v1326
    %v1337 = vpack.c.b16 %v1329, %v1328
    %1346 = vmatprep.subr.bf16.mxu0 0
    %1347 = vmatpush1.bf16.msra.mxu0 %v1330
    %1348 = vmatprep.subr.bf16.mxu0 0
    %1349 = vmatpush1.bf16.msra.mxu0 %v1331
    %1350 = vmatprep.subr.bf16.mxu0 0
    %1351 = vmatpush1.bf16.msra.mxu0 %v1332
    %1352 = vmatprep.subr.bf16.mxu0 0
    %1353 = vmatpush1.bf16.msra.mxu0 %v1333
    %1354 = vmatprep.subr.bf16.mxu0 0
    %1355 = vmatpush1.bf16.msra.mxu0 %v1334
    %1356 = vmatprep.subr.bf16.mxu0 0
    %1357 = vmatpush1.bf16.msra.mxu0 %v1335
    %1358 = vmatprep.subr.bf16.mxu0 0
    %1359 = vmatpush1.bf16.msra.mxu0 %v1336
    %1360 = vmatprep.subr.bf16.mxu0 0
    %1361 = vmatpush1.bf16.msra.mxu0 %v1337
    %1362 = vmatprep.subr.bf16.mxu0 0
    %1363 = vmatpush1.bf16.msra.mxu0 0
    %1364 = vmatprep.subr.bf16.mxu0 0
    %1365 = vmatpush1.bf16.msra.mxu0 0
    %1366 = vmatprep.subr.bf16.mxu0 0
    %1367 = vmatpush1.bf16.msra.mxu0 0
    %1368 = vmatprep.subr.bf16.mxu0 0
    %1369 = vmatpush1.bf16.msra.mxu0 0
    %1370 = vmatprep.subr.bf16.mxu0 0
    %1371 = vmatpush1.bf16.msra.mxu0 0
    %1372 = vmatprep.subr.bf16.mxu0 0
    %1373 = vmatpush1.bf16.msra.mxu0 0
    %1374 = vmatprep.subr.bf16.mxu0 0
    %1375 = vmatpush1.bf16.msra.mxu0 0
    %1376 = vmatprep.subr.bf16.mxu0 0
    %1377 = vmatpush1.bf16.msra.mxu0 0
    %1378 = vmatprep.mubr.bf16.mxu0 0
    %1379 = vmatmul.mubr.bf16.gmra.mrb[0].mxu0 %v1173
    %v1380 = vpop.f32.mrb[0].mxu0
    %v1381 = vadd.f32 %v1293, %v1380
    %v1382 = vpop.f32.mrb[0].mxu0
    %v1383 = vpop.f32.mrb[0].mxu0
    %v1384 = vpop.f32.mrb[0].mxu0
    %1385 = vdwg.mxu0
    %s1386 = scalar_lea.vmem [#allocation3], 4
    %v1387 = vld [vmem:[%s1386] ss:$4 sm:$0xf]
    %v1388 = vpack.c.bf16 %v1387, %v1387
    %s1389 = scalar_lea.vmem %s5, 128
    %v1390 = vld [vmem:[%s1389] sm:$0xf]
    %v1391 = vld [vmem:[%s1389 + $0x4] sm:$0xf]
    %v1392 = vld [vmem:[%s1389 + $0x8] sm:$0xf]
    %v1393 = vld [vmem:[%s1389 + $0xc] sm:$0xf]
    %v1394 = vld [vmem:[%s1389 + $0x10] sm:$0xf]
    %v1395 = vld [vmem:[%s1389 + $0x14] sm:$0xf]
    %v1396 = vld [vmem:[%s1389 + $0x18] sm:$0xf]
    %v1397 = vld [vmem:[%s1389 + $0x1c] sm:$0xf]
    %v1398 = vld [vmem:[%s1389 + $0x20] sm:$0xf]
    %v1399 = vld [vmem:[%s1389 + $0x24] sm:$0xf]
    %v1400 = vld [vmem:[%s1389 + $0x28] sm:$0xf]
    %v1401 = vld [vmem:[%s1389 + $0x2c] sm:$0xf]
    %v1402 = vld [vmem:[%s1389 + $0x30] sm:$0xf]
    %v1403 = vld [vmem:[%s1389 + $0x34] sm:$0xf]
    %v1404 = vld [vmem:[%s1389 + $0x38] sm:$0xf]
    %v1405 = vld [vmem:[%s1389 + $0x3c] sm:$0xf]
    %v1422 = vunpack.c.l.b16 %v1390
    %v1423 = vunpack.c.l.b16 %v1391
    %v1424 = vunpack.c.l.b16 %v1392
    %v1425 = vunpack.c.l.b16 %v1393
    %v1426 = vunpack.c.l.b16 %v1394
    %v1427 = vunpack.c.l.b16 %v1395
    %v1428 = vunpack.c.l.b16 %v1396
    %v1429 = vunpack.c.l.b16 %v1397
    %v1430 = vunpack.c.l.b16 %v1398
    %v1431 = vunpack.c.l.b16 %v1399
    %v1432 = vunpack.c.l.b16 %v1400
    %v1433 = vunpack.c.l.b16 %v1401
    %v1434 = vunpack.c.l.b16 %v1402
    %v1435 = vunpack.c.l.b16 %v1403
    %v1436 = vunpack.c.l.b16 %v1404
    %v1437 = vunpack.c.l.b16 %v1405
    %v1438 = vpack.c.b16 %v1423, %v1422
    %v1439 = vpack.c.b16 %v1425, %v1424
    %v1440 = vpack.c.b16 %v1427, %v1426
    %v1441 = vpack.c.b16 %v1429, %v1428
    %v1442 = vpack.c.b16 %v1431, %v1430
    %v1443 = vpack.c.b16 %v1433, %v1432
    %v1444 = vpack.c.b16 %v1435, %v1434
    %v1445 = vpack.c.b16 %v1437, %v1436
    %1454 = vmatprep.subr.bf16.mxu0 0
    %1455 = vmatpush1.bf16.msra.mxu0 %v1438
    %1456 = vmatprep.subr.bf16.mxu0 0
    %1457 = vmatpush1.bf16.msra.mxu0 %v1439
    %1458 = vmatprep.subr.bf16.mxu0 0
    %1459 = vmatpush1.bf16.msra.mxu0 %v1440
    %1460 = vmatprep.subr.bf16.mxu0 0
    %1461 = vmatpush1.bf16.msra.mxu0 %v1441
    %1462 = vmatprep.subr.bf16.mxu0 0
    %1463 = vmatpush1.bf16.msra.mxu0 %v1442
    %1464 = vmatprep.subr.bf16.mxu0 0
    %1465 = vmatpush1.bf16.msra.mxu0 %v1443
    %1466 = vmatprep.subr.bf16.mxu0 0
    %1467 = vmatpush1.bf16.msra.mxu0 %v1444
    %1468 = vmatprep.subr.bf16.mxu0 0
    %1469 = vmatpush1.bf16.msra.mxu0 %v1445
    %1470 = vmatprep.subr.bf16.mxu0 0
    %1471 = vmatpush1.bf16.msra.mxu0 0
    %1472 = vmatprep.subr.bf16.mxu0 0
    %1473 = vmatpush1.bf16.msra.mxu0 0
    %1474 = vmatprep.subr.bf16.mxu0 0
    %1475 = vmatpush1.bf16.msra.mxu0 0
    %1476 = vmatprep.subr.bf16.mxu0 0
    %1477 = vmatpush1.bf16.msra.mxu0 0
    %1478 = vmatprep.subr.bf16.mxu0 0
    %1479 = vmatpush1.bf16.msra.mxu0 0
    %1480 = vmatprep.subr.bf16.mxu0 0
    %1481 = vmatpush1.bf16.msra.mxu0 0
    %1482 = vmatprep.subr.bf16.mxu0 0
    %1483 = vmatpush1.bf16.msra.mxu0 0
    %1484 = vmatprep.subr.bf16.mxu0 0
    %1485 = vmatpush1.bf16.msra.mxu0 0
    %1486 = vmatprep.mubr.bf16.mxu0 0
    %1487 = vmatmul.mubr.bf16.gmra.mrb[0].mxu0 %v1388
    %v1488 = vpop.f32.mrb[0].mxu0
    %v1489 = vadd.f32 0.0, %v1488
    %v1490 = vpop.f32.mrb[0].mxu0
    %v1491 = vpop.f32.mrb[0].mxu0
    %v1492 = vpop.f32.mrb[0].mxu0
    %1493 = vdwg.mxu0
    %v1494 = vadd.f32 %v1381, %v1489
    %s1495 = scalar_lea.vmem [#allocation3], 6
    %v1496 = vld [vmem:[%s1495] ss:$4 sm:$0xf]
    %v1497 = vpack.c.bf16 %v1496, %v1496
    %s1498 = scalar_lea.vmem %s5, 192
    %v1499 = vld [vmem:[%s1498] sm:$0xf]
    %v1500 = vld [vmem:[%s1498 + $0x4] sm:$0xf]
    %v1501 = vld [vmem:[%s1498 + $0x8] sm:$0xf]
    %v1502 = vld [vmem:[%s1498 + $0xc] sm:$0xf]
    %v1503 = vld [vmem:[%s1498 + $0x10] sm:$0xf]
    %v1504 = vld [vmem:[%s1498 + $0x14] sm:$0xf]
    %v1505 = vld [vmem:[%s1498 + $0x18] sm:$0xf]
    %v1506 = vld [vmem:[%s1498 + $0x1c] sm:$0xf]
    %v1507 = vld [vmem:[%s1498 + $0x20] sm:$0xf]
    %v1508 = vld [vmem:[%s1498 + $0x24] sm:$0xf]
    %v1509 = vld [vmem:[%s1498 + $0x28] sm:$0xf]
    %v1510 = vld [vmem:[%s1498 + $0x2c] sm:$0xf]
    %v1511 = vld [vmem:[%s1498 + $0x30] sm:$0xf]
    %v1512 = vld [vmem:[%s1498 + $0x34] sm:$0xf]
    %v1513 = vld [vmem:[%s1498 + $0x38] sm:$0xf]
    %v1514 = vld [vmem:[%s1498 + $0x3c] sm:$0xf]
    %v1531 = vunpack.c.l.b16 %v1499
    %v1532 = vunpack.c.l.b16 %v1500
    %v1533 = vunpack.c.l.b16 %v1501
    %v1534 = vunpack.c.l.b16 %v1502
    %v1535 = vunpack.c.l.b16 %v1503
    %v1536 = vunpack.c.l.b16 %v1504
    %v1537 = vunpack.c.l.b16 %v1505
    %v1538 = vunpack.c.l.b16 %v1506
    %v1539 = vunpack.c.l.b16 %v1507
    %v1540 = vunpack.c.l.b16 %v1508
    %v1541 = vunpack.c.l.b16 %v1509
    %v1542 = vunpack.c.l.b16 %v1510
    %v1543 = vunpack.c.l.b16 %v1511
    %v1544 = vunpack.c.l.b16 %v1512
    %v1545 = vunpack.c.l.b16 %v1513
    %v1546 = vunpack.c.l.b16 %v1514
    %v1547 = vpack.c.b16 %v1532, %v1531
    %v1548 = vpack.c.b16 %v1534, %v1533
    %v1549 = vpack.c.b16 %v1536, %v1535
    %v1550 = vpack.c.b16 %v1538, %v1537
    %v1551 = vpack.c.b16 %v1540, %v1539
    %v1552 = vpack.c.b16 %v1542, %v1541
    %v1553 = vpack.c.b16 %v1544, %v1543
    %v1554 = vpack.c.b16 %v1546, %v1545
    %1563 = vmatprep.subr.bf16.mxu0 0
    %1564 = vmatpush1.bf16.msra.mxu0 %v1547
    %1565 = vmatprep.subr.bf16.mxu0 0
    %1566 = vmatpush1.bf16.msra.mxu0 %v1548
    %1567 = vmatprep.subr.bf16.mxu0 0
    %1568 = vmatpush1.bf16.msra.mxu0 %v1549
    %1569 = vmatprep.subr.bf16.mxu0 0
    %1570 = vmatpush1.bf16.msra.mxu0 %v1550
    %1571 = vmatprep.subr.bf16.mxu0 0
    %1572 = vmatpush1.bf16.msra.mxu0 %v1551
    %1573 = vmatprep.subr.bf16.mxu0 0
    %1574 = vmatpush1.bf16.msra.mxu0 %v1552
    %1575 = vmatprep.subr.bf16.mxu0 0
    %1576 = vmatpush1.bf16.msra.mxu0 %v1553
    %1577 = vmatprep.subr.bf16.mxu0 0
    %1578 = vmatpush1.bf16.msra.mxu0 %v1554
    %1579 = vmatprep.subr.bf16.mxu0 0
    %1580 = vmatpush1.bf16.msra.mxu0 0
    %1581 = vmatprep.subr.bf16.mxu0 0
    %1582 = vmatpush1.bf16.msra.mxu0 0
    %1583 = vmatprep.subr.bf16.mxu0 0
    %1584 = vmatpush1.bf16.msra.mxu0 0
    %1585 = vmatprep.subr.bf16.mxu0 0
    %1586 = vmatpush1.bf16.msra.mxu0 0
    %1587 = vmatprep.subr.bf16.mxu0 0
    %1588 = vmatpush1.bf16.msra.mxu0 0
    %1589 = vmatprep.subr.bf16.mxu0 0
    %1590 = vmatpush1.bf16.msra.mxu0 0
    %1591 = vmatprep.subr.bf16.mxu0 0
    %1592 = vmatpush1.bf16.msra.mxu0 0
    %1593 = vmatprep.subr.bf16.mxu0 0
    %1594 = vmatpush1.bf16.msra.mxu0 0
    %1595 = vmatprep.mubr.bf16.mxu0 0
    %1596 = vmatmul.mubr.bf16.gmra.mrb[0].mxu0 %v1497
    %v1597 = vpop.f32.mrb[0].mxu0
    %v1598 = vadd.f32 0.0, %v1597
    %v1599 = vpop.f32.mrb[0].mxu0
    %v1600 = vpop.f32.mrb[0].mxu0
    %v1601 = vpop.f32.mrb[0].mxu0
    %1602 = vdwg.mxu0
    %v1603 = vadd.f32 %v1494, %v1598
    %v1604 = vld [vmem:[%s6] sm:$0x1]
    %v1606 = vlaneseq
    %v1607 = vshrl.u32 %v1606, 7
    %v1608 = vsub.s32 0, %v1607
    %v1609 = vrot.slane %v1604, %v1608
    %v1611 = vadd.f32 %v1603, %v1609
    %v1612 = vmax.f32 %v1611, 0.0
    %vm1613 = vcmask 1043456
    %v1614 = vsel %vm1613, %v1612, 0.0
    %v1615 = vrot.slane %v1614, 4
    %v1616 = vadd.f32 %v1614, %v1615
    %v1617 = vrot.slane %v1616, 2
    %v1618 = vadd.f32 %v1616, %v1617
    %v1619 = vrot.slane %v1618, 1
    %v1620 = vadd.f32 %v1618, %v1619
    %1621 = vst [vmem:[#allocation4] sm:$0x1] %v1620
    %s1622 = scalar_lea.vmem [#allocation3], 1
    %v1623 = vld [vmem:[%s1622] ss:$4 sm:$0xf]
    %v1624 = vpack.c.bf16 %v1623, %v1623
    %v1625 = vld [vmem:[%s5] sm:$0xf]
    %v1626 = vld [vmem:[%s5 + $0x4] sm:$0xf]
    %v1627 = vld [vmem:[%s5 + $0x8] sm:$0xf]
    %v1628 = vld [vmem:[%s5 + $0xc] sm:$0xf]
    %v1629 = vld [vmem:[%s5 + $0x10] sm:$0xf]
    %v1630 = vld [vmem:[%s5 + $0x14] sm:$0xf]
    %v1631 = vld [vmem:[%s5 + $0x18] sm:$0xf]
    %v1632 = vld [vmem:[%s5 + $0x1c] sm:$0xf]
    %v1633 = vld [vmem:[%s5 + $0x20] sm:$0xf]
    %v1634 = vld [vmem:[%s5 + $0x24] sm:$0xf]
    %v1635 = vld [vmem:[%s5 + $0x28] sm:$0xf]
    %v1636 = vld [vmem:[%s5 + $0x2c] sm:$0xf]
    %v1637 = vld [vmem:[%s5 + $0x30] sm:$0xf]
    %v1638 = vld [vmem:[%s5 + $0x34] sm:$0xf]
    %v1639 = vld [vmem:[%s5 + $0x38] sm:$0xf]
    %v1640 = vld [vmem:[%s5 + $0x3c] sm:$0xf]
    %s1641 = scalar_lea.vmem [#allocation3], 3
    %v1642 = vld [vmem:[%s1641] ss:$4 sm:$0xf]
    %v1643 = vpack.c.bf16 %v1642, %v1642
    %v1644 = vld [vmem:[%s1193] sm:$0xf]
    %v1645 = vld [vmem:[%s1193 + $0x4] sm:$0xf]
    %v1646 = vld [vmem:[%s1193 + $0x8] sm:$0xf]
    %v1647 = vld [vmem:[%s1193 + $0xc] sm:$0xf]
    %v1648 = vld [vmem:[%s1193 + $0x10] sm:$0xf]
    %v1649 = vld [vmem:[%s1193 + $0x14] sm:$0xf]
    %v1650 = vld [vmem:[%s1193 + $0x18] sm:$0xf]
    %v1651 = vld [vmem:[%s1193 + $0x1c] sm:$0xf]
    %v1652 = vld [vmem:[%s1193 + $0x20] sm:$0xf]
    %v1653 = vld [vmem:[%s1193 + $0x24] sm:$0xf]
    %v1654 = vld [vmem:[%s1193 + $0x28] sm:$0xf]
    %v1655 = vld [vmem:[%s1193 + $0x2c] sm:$0xf]
    %v1656 = vld [vmem:[%s1193 + $0x30] sm:$0xf]
    %v1657 = vld [vmem:[%s1193 + $0x34] sm:$0xf]
    %v1658 = vld [vmem:[%s1193 + $0x38] sm:$0xf]
    %v1659 = vld [vmem:[%s1193 + $0x3c] sm:$0xf]
    %v1676 = vunpack.c.l.b16 %v1644
    %v1677 = vunpack.c.l.b16 %v1645
    %v1678 = vunpack.c.l.b16 %v1646
    %v1679 = vunpack.c.l.b16 %v1647
    %v1680 = vunpack.c.l.b16 %v1648
    %v1681 = vunpack.c.l.b16 %v1649
    %v1682 = vunpack.c.l.b16 %v1650
    %v1683 = vunpack.c.l.b16 %v1651
    %v1684 = vunpack.c.l.b16 %v1652
    %v1685 = vunpack.c.l.b16 %v1653
    %v1686 = vunpack.c.l.b16 %v1654
    %v1687 = vunpack.c.l.b16 %v1655
    %v1688 = vunpack.c.l.b16 %v1656
    %v1689 = vunpack.c.l.b16 %v1657
    %v1690 = vunpack.c.l.b16 %v1658
    %v1691 = vunpack.c.l.b16 %v1659
    %v1692 = vpack.c.b16 %v1677, %v1676
    %v1693 = vpack.c.b16 %v1679, %v1678
    %v1694 = vpack.c.b16 %v1681, %v1680
    %v1695 = vpack.c.b16 %v1683, %v1682
    %v1696 = vpack.c.b16 %v1685, %v1684
    %v1697 = vpack.c.b16 %v1687, %v1686
    %v1698 = vpack.c.b16 %v1689, %v1688
    %v1699 = vpack.c.b16 %v1691, %v1690
    %1708 = vmatprep.subr.bf16.mxu0 0
    %1709 = vmatpush1.bf16.msra.mxu0 %v1692
    %1710 = vmatprep.subr.bf16.mxu0 0
    %1711 = vmatpush1.bf16.msra.mxu0 %v1693
    %1712 = vmatprep.subr.bf16.mxu0 0
    %1713 = vmatpush1.bf16.msra.mxu0 %v1694
    %1714 = vmatprep.subr.bf16.mxu0 0
    %1715 = vmatpush1.bf16.msra.mxu0 %v1695
    %1716 = vmatprep.subr.bf16.mxu0 0
    %1717 = vmatpush1.bf16.msra.mxu0 %v1696
    %1718 = vmatprep.subr.bf16.mxu0 0
    %1719 = vmatpush1.bf16.msra.mxu0 %v1697
    %1720 = vmatprep.subr.bf16.mxu0 0
    %1721 = vmatpush1.bf16.msra.mxu0 %v1698
    %1722 = vmatprep.subr.bf16.mxu0 0
    %1723 = vmatpush1.bf16.msra.mxu0 %v1699
    %1724 = vmatprep.subr.bf16.mxu0 0
    %1725 = vmatpush1.bf16.msra.mxu0 0
    %1726 = vmatprep.subr.bf16.mxu0 0
    %1727 = vmatpush1.bf16.msra.mxu0 0
    %1728 = vmatprep.subr.bf16.mxu0 0
    %1729 = vmatpush1.bf16.msra.mxu0 0
    %1730 = vmatprep.subr.bf16.mxu0 0
    %1731 = vmatpush1.bf16.msra.mxu0 0
    %1732 = vmatprep.subr.bf16.mxu0 0
    %1733 = vmatpush1.bf16.msra.mxu0 0
    %1734 = vmatprep.subr.bf16.mxu0 0
    %1735 = vmatpush1.bf16.msra.mxu0 0
    %1736 = vmatprep.subr.bf16.mxu0 0
    %1737 = vmatpush1.bf16.msra.mxu0 0
    %1738 = vmatprep.subr.bf16.mxu0 0
    %1739 = vmatpush1.bf16.msra.mxu0 0
    %1740 = vmatprep.mubr.bf16.mxu0 0
    %1741 = vmatmul.mubr.bf16.gmra.mrb[0].mxu0 %v1643
    %v1742 = vpop.f32.mrb[0].mxu0
    %v1743 = vadd.f32 0.0, %v1742
    %v1744 = vpop.f32.mrb[0].mxu0
    %v1745 = vpop.f32.mrb[0].mxu0
    %v1746 = vpop.f32.mrb[0].mxu0
    %1747 = vdwg.mxu0
    %v1764 = vunpack.c.l.b16 %v1625
    %v1765 = vunpack.c.l.b16 %v1626
    %v1766 = vunpack.c.l.b16 %v1627
    %v1767 = vunpack.c.l.b16 %v1628
    %v1768 = vunpack.c.l.b16 %v1629
    %v1769 = vunpack.c.l.b16 %v1630
    %v1770 = vunpack.c.l.b16 %v1631
    %v1771 = vunpack.c.l.b16 %v1632
    %v1772 = vunpack.c.l.b16 %v1633
    %v1773 = vunpack.c.l.b16 %v1634
    %v1774 = vunpack.c.l.b16 %v1635
    %v1775 = vunpack.c.l.b16 %v1636
    %v1776 = vunpack.c.l.b16 %v1637
    %v1777 = vunpack.c.l.b16 %v1638
    %v1778 = vunpack.c.l.b16 %v1639
    %v1779 = vunpack.c.l.b16 %v1640
    %v1780 = vpack.c.b16 %v1765, %v1764
    %v1781 = vpack.c.b16 %v1767, %v1766
    %v1782 = vpack.c.b16 %v1769, %v1768
    %v1783 = vpack.c.b16 %v1771, %v1770
    %v1784 = vpack.c.b16 %v1773, %v1772
    %v1785 = vpack.c.b16 %v1775, %v1774
    %v1786 = vpack.c.b16 %v1777, %v1776
    %v1787 = vpack.c.b16 %v1779, %v1778
    %1796 = vmatprep.subr.bf16.mxu0 0
    %1797 = vmatpush1.bf16.msra.mxu0 %v1780
    %1798 = vmatprep.subr.bf16.mxu0 0
    %1799 = vmatpush1.bf16.msra.mxu0 %v1781
    %1800 = vmatprep.subr.bf16.mxu0 0
    %1801 = vmatpush1.bf16.msra.mxu0 %v1782
    %1802 = vmatprep.subr.bf16.mxu0 0
    %1803 = vmatpush1.bf16.msra.mxu0 %v1783
    %1804 = vmatprep.subr.bf16.mxu0 0
    %1805 = vmatpush1.bf16.msra.mxu0 %v1784
    %1806 = vmatprep.subr.bf16.mxu0 0
    %1807 = vmatpush1.bf16.msra.mxu0 %v1785
    %1808 = vmatprep.subr.bf16.mxu0 0
    %1809 = vmatpush1.bf16.msra.mxu0 %v1786
    %1810 = vmatprep.subr.bf16.mxu0 0
    %1811 = vmatpush1.bf16.msra.mxu0 %v1787
    %1812 = vmatprep.subr.bf16.mxu0 0
    %1813 = vmatpush1.bf16.msra.mxu0 0
    %1814 = vmatprep.subr.bf16.mxu0 0
    %1815 = vmatpush1.bf16.msra.mxu0 0
    %1816 = vmatprep.subr.bf16.mxu0 0
    %1817 = vmatpush1.bf16.msra.mxu0 0
    %1818 = vmatprep.subr.bf16.mxu0 0
    %1819 = vmatpush1.bf16.msra.mxu0 0
    %1820 = vmatprep.subr.bf16.mxu0 0
    %1821 = vmatpush1.bf16.msra.mxu0 0
    %1822 = vmatprep.subr.bf16.mxu0 0
    %1823 = vmatpush1.bf16.msra.mxu0 0
    %1824 = vmatprep.subr.bf16.mxu0 0
    %1825 = vmatpush1.bf16.msra.mxu0 0
    %1826 = vmatprep.subr.bf16.mxu0 0
    %1827 = vmatpush1.bf16.msra.mxu0 0
    %1828 = vmatprep.mubr.bf16.mxu0 0
    %1829 = vmatmul.mubr.bf16.gmra.mrb[0].mxu0 %v1624
    %v1830 = vpop.f32.mrb[0].mxu0
    %v1831 = vadd.f32 %v1743, %v1830
    %v1832 = vpop.f32.mrb[0].mxu0
    %v1833 = vpop.f32.mrb[0].mxu0
    %v1834 = vpop.f32.mrb[0].mxu0
    %1835 = vdwg.mxu0
    %s1836 = scalar_lea.vmem [#allocation3], 5
    %v1837 = vld [vmem:[%s1836] ss:$4 sm:$0xf]
    %v1838 = vpack.c.bf16 %v1837, %v1837
    %v1839 = vld [vmem:[%s1389] sm:$0xf]
    %v1840 = vld [vmem:[%s1389 + $0x4] sm:$0xf]
    %v1841 = vld [vmem:[%s1389 + $0x8] sm:$0xf]
    %v1842 = vld [vmem:[%s1389 + $0xc] sm:$0xf]
    %v1843 = vld [vmem:[%s1389 + $0x10] sm:$0xf]
    %v1844 = vld [vmem:[%s1389 + $0x14] sm:$0xf]
    %v1845 = vld [vmem:[%s1389 + $0x18] sm:$0xf]
    %v1846 = vld [vmem:[%s1389 + $0x1c] sm:$0xf]
    %v1847 = vld [vmem:[%s1389 + $0x20] sm:$0xf]
    %v1848 = vld [vmem:[%s1389 + $0x24] sm:$0xf]
    %v1849 = vld [vmem:[%s1389 + $0x28] sm:$0xf]
    %v1850 = vld [vmem:[%s1389 + $0x2c] sm:$0xf]
    %v1851 = vld [vmem:[%s1389 + $0x30] sm:$0xf]
    %v1852 = vld [vmem:[%s1389 + $0x34] sm:$0xf]
    %v1853 = vld [vmem:[%s1389 + $0x38] sm:$0xf]
    %v1854 = vld [vmem:[%s1389 + $0x3c] sm:$0xf]
    %v1871 = vunpack.c.l.b16 %v1839
    %v1872 = vunpack.c.l.b16 %v1840
    %v1873 = vunpack.c.l.b16 %v1841
    %v1874 = vunpack.c.l.b16 %v1842
    %v1875 = vunpack.c.l.b16 %v1843
    %v1876 = vunpack.c.l.b16 %v1844
    %v1877 = vunpack.c.l.b16 %v1845
    %v1878 = vunpack.c.l.b16 %v1846
    %v1879 = vunpack.c.l.b16 %v1847
    %v1880 = vunpack.c.l.b16 %v1848
    %v1881 = vunpack.c.l.b16 %v1849
    %v1882 = vunpack.c.l.b16 %v1850
    %v1883 = vunpack.c.l.b16 %v1851
    %v1884 = vunpack.c.l.b16 %v1852
    %v1885 = vunpack.c.l.b16 %v1853
    %v1886 = vunpack.c.l.b16 %v1854
    %v1887 = vpack.c.b16 %v1872, %v1871
    %v1888 = vpack.c.b16 %v1874, %v1873
    %v1889 = vpack.c.b16 %v1876, %v1875
    %v1890 = vpack.c.b16 %v1878, %v1877
    %v1891 = vpack.c.b16 %v1880, %v1879
    %v1892 = vpack.c.b16 %v1882, %v1881
    %v1893 = vpack.c.b16 %v1884, %v1883
    %v1894 = vpack.c.b16 %v1886, %v1885
    %1903 = vmatprep.subr.bf16.mxu0 0
    %1904 = vmatpush1.bf16.msra.mxu0 %v1887
    %1905 = vmatprep.subr.bf16.mxu0 0
    %1906 = vmatpush1.bf16.msra.mxu0 %v1888
    %1907 = vmatprep.subr.bf16.mxu0 0
    %1908 = vmatpush1.bf16.msra.mxu0 %v1889
    %1909 = vmatprep.subr.bf16.mxu0 0
    %1910 = vmatpush1.bf16.msra.mxu0 %v1890
    %1911 = vmatprep.subr.bf16.mxu0 0
    %1912 = vmatpush1.bf16.msra.mxu0 %v1891
    %1913 = vmatprep.subr.bf16.mxu0 0
    %1914 = vmatpush1.bf16.msra.mxu0 %v1892
    %1915 = vmatprep.subr.bf16.mxu0 0
    %1916 = vmatpush1.bf16.msra.mxu0 %v1893
    %1917 = vmatprep.subr.bf16.mxu0 0
    %1918 = vmatpush1.bf16.msra.mxu0 %v1894
    %1919 = vmatprep.subr.bf16.mxu0 0
    %1920 = vmatpush1.bf16.msra.mxu0 0
    %1921 = vmatprep.subr.bf16.mxu0 0
    %1922 = vmatpush1.bf16.msra.mxu0 0
    %1923 = vmatprep.subr.bf16.mxu0 0
    %1924 = vmatpush1.bf16.msra.mxu0 0
    %1925 = vmatprep.subr.bf16.mxu0 0
    %1926 = vmatpush1.bf16.msra.mxu0 0
    %1927 = vmatprep.subr.bf16.mxu0 0
    %1928 = vmatpush1.bf16.msra.mxu0 0
    %1929 = vmatprep.subr.bf16.mxu0 0
    %1930 = vmatpush1.bf16.msra.mxu0 0
    %1931 = vmatprep.subr.bf16.mxu0 0
    %1932 = vmatpush1.bf16.msra.mxu0 0
    %1933 = vmatprep.subr.bf16.mxu0 0
    %1934 = vmatpush1.bf16.msra.mxu0 0
    %1935 = vmatprep.mubr.bf16.mxu0 0
    %1936 = vmatmul.mubr.bf16.gmra.mrb[0].mxu0 %v1838
    %v1937 = vpop.f32.mrb[0].mxu0
    %v1938 = vadd.f32 0.0, %v1937
    %v1939 = vpop.f32.mrb[0].mxu0
    %v1940 = vpop.f32.mrb[0].mxu0
    %v1941 = vpop.f32.mrb[0].mxu0
    %1942 = vdwg.mxu0
    %v1943 = vadd.f32 %v1831, %v1938
    %s1944 = scalar_lea.vmem [#allocation3], 7
    %v1945 = vld [vmem:[%s1944] ss:$4 sm:$0xf]
    %v1946 = vpack.c.bf16 %v1945, %v1945
    %v1947 = vld [vmem:[%s1498] sm:$0xf]
    %v1948 = vld [vmem:[%s1498 + $0x4] sm:$0xf]
    %v1949 = vld [vmem:[%s1498 + $0x8] sm:$0xf]
    %v1950 = vld [vmem:[%s1498 + $0xc] sm:$0xf]
    %v1951 = vld [vmem:[%s1498 + $0x10] sm:$0xf]
    %v1952 = vld [vmem:[%s1498 + $0x14] sm:$0xf]
    %v1953 = vld [vmem:[%s1498 + $0x18] sm:$0xf]
    %v1954 = vld [vmem:[%s1498 + $0x1c] sm:$0xf]
    %v1955 = vld [vmem:[%s1498 + $0x20] sm:$0xf]
    %v1956 = vld [vmem:[%s1498 + $0x24] sm:$0xf]
    %v1957 = vld [vmem:[%s1498 + $0x28] sm:$0xf]
    %v1958 = vld [vmem:[%s1498 + $0x2c] sm:$0xf]
    %v1959 = vld [vmem:[%s1498 + $0x30] sm:$0xf]
    %v1960 = vld [vmem:[%s1498 + $0x34] sm:$0xf]
    %v1961 = vld [vmem:[%s1498 + $0x38] sm:$0xf]
    %v1962 = vld [vmem:[%s1498 + $0x3c] sm:$0xf]
    %v1979 = vunpack.c.l.b16 %v1947
    %v1980 = vunpack.c.l.b16 %v1948
    %v1981 = vunpack.c.l.b16 %v1949
    %v1982 = vunpack.c.l.b16 %v1950
    %v1983 = vunpack.c.l.b16 %v1951
    %v1984 = vunpack.c.l.b16 %v1952
    %v1985 = vunpack.c.l.b16 %v1953
    %v1986 = vunpack.c.l.b16 %v1954
    %v1987 = vunpack.c.l.b16 %v1955
    %v1988 = vunpack.c.l.b16 %v1956
    %v1989 = vunpack.c.l.b16 %v1957
    %v1990 = vunpack.c.l.b16 %v1958
    %v1991 = vunpack.c.l.b16 %v1959
    %v1992 = vunpack.c.l.b16 %v1960
    %v1993 = vunpack.c.l.b16 %v1961
    %v1994 = vunpack.c.l.b16 %v1962
    %v1995 = vpack.c.b16 %v1980, %v1979
    %v1996 = vpack.c.b16 %v1982, %v1981
    %v1997 = vpack.c.b16 %v1984, %v1983
    %v1998 = vpack.c.b16 %v1986, %v1985
    %v1999 = vpack.c.b16 %v1988, %v1987
    %v2000 = vpack.c.b16 %v1990, %v1989
    %v2001 = vpack.c.b16 %v1992, %v1991
    %v2002 = vpack.c.b16 %v1994, %v1993
    %2011 = vmatprep.subr.bf16.mxu0 0
    %2012 = vmatpush1.bf16.msra.mxu0 %v1995
    %2013 = vmatprep.subr.bf16.mxu0 0
    %2014 = vmatpush1.bf16.msra.mxu0 %v1996
    %2015 = vmatprep.subr.bf16.mxu0 0
    %2016 = vmatpush1.bf16.msra.mxu0 %v1997
    %2017 = vmatprep.subr.bf16.mxu0 0
    %2018 = vmatpush1.bf16.msra.mxu0 %v1998
    %2019 = vmatprep.subr.bf16.mxu0 0
    %2020 = vmatpush1.bf16.msra.mxu0 %v1999
    %2021 = vmatprep.subr.bf16.mxu0 0
    %2022 = vmatpush1.bf16.msra.mxu0 %v2000
    %2023 = vmatprep.subr.bf16.mxu0 0
    %2024 = vmatpush1.bf16.msra.mxu0 %v2001
    %2025 = vmatprep.subr.bf16.mxu0 0
    %2026 = vmatpush1.bf16.msra.mxu0 %v2002
    %2027 = vmatprep.subr.bf16.mxu0 0
    %2028 = vmatpush1.bf16.msra.mxu0 0
    %2029 = vmatprep.subr.bf16.mxu0 0
    %2030 = vmatpush1.bf16.msra.mxu0 0
    %2031 = vmatprep.subr.bf16.mxu0 0
    %2032 = vmatpush1.bf16.msra.mxu0 0
    %2033 = vmatprep.subr.bf16.mxu0 0
    %2034 = vmatpush1.bf16.msra.mxu0 0
    %2035 = vmatprep.subr.bf16.mxu0 0
    %2036 = vmatpush1.bf16.msra.mxu0 0
    %2037 = vmatprep.subr.bf16.mxu0 0
    %2038 = vmatpush1.bf16.msra.mxu0 0
    %2039 = vmatprep.subr.bf16.mxu0 0
    %2040 = vmatpush1.bf16.msra.mxu0 0
    %2041 = vmatprep.subr.bf16.mxu0 0
    %2042 = vmatpush1.bf16.msra.mxu0 0
    %2043 = vmatprep.mubr.bf16.mxu0 0
    %2044 = vmatmul.mubr.bf16.gmra.mrb[0].mxu0 %v1946
    %v2045 = vpop.f32.mrb[0].mxu0
    %v2046 = vadd.f32 0.0, %v2045
    %v2047 = vpop.f32.mrb[0].mxu0
    %v2048 = vpop.f32.mrb[0].mxu0
    %v2049 = vpop.f32.mrb[0].mxu0
    %2050 = vdwg.mxu0
    %v2051 = vadd.f32 %v1943, %v2046
    %v2052 = vld [vmem:[%s6] sm:$0x1]
    %v2054 = vlaneseq
    %v2055 = vshrl.u32 %v2054, 7
    %v2056 = vsub.s32 0, %v2055
    %v2057 = vrot.slane %v2052, %v2056
    %v2059 = vadd.f32 %v2051, %v2057
    %v2060 = vmax.f32 %v2059, 0.0
    %v2061 = vsel %vm1613, %v2060, 0.0
    %v2062 = vrot.slane %v2061, 4
    %v2063 = vadd.f32 %v2061, %v2062
    %v2064 = vrot.slane %v2063, 2
    %v2065 = vadd.f32 %v2063, %v2064
    %v2066 = vrot.slane %v2065, 1
    %v2067 = vadd.f32 %v2065, %v2066
    %2068 = vst [vmem:[#allocation4 + $0x1] sm:$0x1] %v2067
    %v2069 = vld [vmem:[#allocation4] sm:$0x3]
    %v2070 = vld [vmem:[%s7] sm:$0xff]
    %v2071 = vld [vmem:[%s7 + $0x8] sm:$0xff]
    %v2072 = vld [vmem:[%s7 + $0x10] sm:$0xff]
    %v2073 = vld [vmem:[%s7 + $0x18] sm:$0xff]
    %v2074 = vld [vmem:[%s7 + $0x20] sm:$0xff]
    %v2075 = vld [vmem:[%s7 + $0x28] sm:$0xff]
    %v2076 = vld [vmem:[%s7 + $0x30] sm:$0xff]
    %v2077 = vld [vmem:[%s7 + $0x38] sm:$0xff]
    %v2078 = vld [vmem:[%s7 + $0x40] sm:$0xff]
    %v2079 = vld [vmem:[%s7 + $0x48] sm:$0xff]
    %v2080 = vld [vmem:[%s7 + $0x50] sm:$0xff]
    %v2081 = vld [vmem:[%s7 + $0x58] sm:$0xff]
    %v2082 = vld [vmem:[%s7 + $0x60] sm:$0xff]
    %v2083 = vld [vmem:[%s7 + $0x68] sm:$0xff]
    %v2084 = vld [vmem:[%s7 + $0x70] sm:$0xff]
    %v2085 = vld [vmem:[%s7 + $0x78] sm:$0xff]
    %v2086 = vld [vmem:[%s8] sm:$0x1]
    %v2088 = vlaneseq
    %v2089 = vshrl.u32 %v2088, 7
    %v2090 = vsub.s32 0, %v2089
    %v2091 = vrot.slane %v2086, %v2090
    %2093 = vmatprep.subr.mxu0 0.0
    %2094 = vmatpush1.msra.mxu0 %v2070
    %2095 = vmatprep.subr.mxu0 0.0
    %2096 = vmatpush1.msra.mxu0 %v2071
    %2097 = vmatprep.subr.mxu0 0.0
    %2098 = vmatpush1.msra.mxu0 %v2072
    %2099 = vmatprep.subr.mxu0 0.0
    %2100 = vmatpush1.msra.mxu0 %v2073
    %2101 = vmatprep.subr.mxu0 0.0
    %2102 = vmatpush1.msra.mxu0 %v2074
    %2103 = vmatprep.subr.mxu0 0.0
    %2104 = vmatpush1.msra.mxu0 %v2075
    %2105 = vmatprep.subr.mxu0 0.0
    %2106 = vmatpush1.msra.mxu0 %v2076
    %2107 = vmatprep.subr.mxu0 0.0
    %2108 = vmatpush1.msra.mxu0 %v2077
    %2109 = vmatprep.subr.mxu0 0.0
    %2110 = vmatpush1.msra.mxu0 %v2078
    %2111 = vmatprep.subr.mxu0 0.0
    %2112 = vmatpush1.msra.mxu0 %v2079
    %2113 = vmatprep.subr.mxu0 0.0
    %2114 = vmatpush1.msra.mxu0 %v2080
    %2115 = vmatprep.subr.mxu0 0.0
    %2116 = vmatpush1.msra.mxu0 %v2081
    %2117 = vmatprep.subr.mxu0 0.0
    %2118 = vmatpush1.msra.mxu0 %v2082
    %2119 = vmatprep.subr.mxu0 0.0
    %2120 = vmatpush1.msra.mxu0 %v2083
    %2121 = vmatprep.subr.mxu0 0.0
    %2122 = vmatpush1.msra.mxu0 %v2084
    %2123 = vmatprep.subr.mxu0 0.0
    %2124 = vmatpush1.msra.mxu0 %v2085
    %2125 = vmatprep.subr.mxu0 0.0
    %2126 = vmatpush1.msra.mxu0 0.0
    %2127 = vmatprep.subr.mxu0 0.0
    %2128 = vmatpush1.msra.mxu0 0.0
    %2129 = vmatprep.subr.mxu0 0.0
    %2130 = vmatpush1.msra.mxu0 0.0
    %2131 = vmatprep.subr.mxu0 0.0
    %2132 = vmatpush1.msra.mxu0 0.0
    %2133 = vmatprep.subr.mxu0 0.0
    %2134 = vmatpush1.msra.mxu0 0.0
    %2135 = vmatprep.subr.mxu0 0.0
    %2136 = vmatpush1.msra.mxu0 0.0
    %2137 = vmatprep.subr.mxu0 0.0
    %2138 = vmatpush1.msra.mxu0 0.0
    %2139 = vmatprep.subr.mxu0 0.0
    %2140 = vmatpush1.msra.mxu0 0.0
    %2141 = vmatprep.subr.mxu0 0.0
    %2142 = vmatpush1.msra.mxu0 0.0
    %2143 = vmatprep.subr.mxu0 0.0
    %2144 = vmatpush1.msra.mxu0 0.0
    %2145 = vmatprep.subr.mxu0 0.0
    %2146 = vmatpush1.msra.mxu0 0.0
    %2147 = vmatprep.subr.mxu0 0.0
    %2148 = vmatpush1.msra.mxu0 0.0
    %2149 = vmatprep.subr.mxu0 0.0
    %2150 = vmatpush1.msra.mxu0 0.0
    %2151 = vmatprep.subr.mxu0 0.0
    %2152 = vmatpush1.msra.mxu0 0.0
    %2153 = vmatprep.subr.mxu0 0.0
    %2154 = vmatpush1.msra.mxu0 0.0
    %2155 = vmatprep.subr.mxu0 0.0
    %2156 = vmatpush1.msra.mxu0 0.0
    %2157 = vmatprep.mubr.f32.mxu0 0.0
    %2158 = vmatmul.mubr.f32.gmra.mrb[0].mxu0 %v2069
    %v2159 = vpop.f32.mrb[0].mxu0
    %v2160 = vadd.f32 %v2091, %v2159
    %v2161 = vpop.f32.mrb[0].mxu0
    %2162 = vdwg.mxu0
    %vm2163 = vcmask 58368
    %2164 = vst.msk [vmem:[#allocation5] sm:$0x3] %vm2163, %v2160
    // Predicated region
    $region38: #{tpu_custom_call.1} parent=1 // pred_check
      _
    $region39: #{tpu_custom_call.1} parent=1 // pred_check_branch
      %2166 = sbr.rel (0) target = $region41
    $region40: #{tpu_custom_call.1} parent=1 // pred_region
      %s2168 = ssub.s32 32, 32
      %2169 = vsyncadd [#allocation6], %s2168
      %s2171 = sshll.u32 [#allocation5], 4
      %s2172 = int_to_ptr.vmem [resolvable:$true] %s2171
      %2174 = dma.vmem_to_hbm [thread:$0]  %s2172, 32, %s9, [#allocation6]
    $region41: #{tpu_custom_call.1} parent=1 // pred_fallthru
      _
    // Predicated region
    $region42: #{tpu_custom_call.1} parent=1 // pred_check
      _
    $region43: #{tpu_custom_call.1} parent=1 // pred_check_branch
      %2176 = sbr.rel (0) target = $region45
    $region44: #{tpu_custom_call.1} parent=1 // pred_region
      %2177 = dma.done [#allocation6], 32
    $region45: #{tpu_custom_call.1} parent=1 // pred_fallthru
      _
    %2178 = vsyncpa [#allocation6], 1

</llo_original>
